<compile_context>
chip_gen: v7x
topology: tpu7x:2x2x1
jax: 0.10.0
libtpu: 0.0.40
codegen_flags: <defaults>
</compile_context>

<pallas_src>
import functools

import jax
import jax.numpy as jnp
from jax.experimental import pallas as pl
from jax.experimental.pallas import tpu as pltpu


# ----------------------------------------------------------------------------
# Fused kernel: embeddings-add + L decoder blocks + final LayerNorm + lm_head.
# Grid = (batch, layer).  One grid step = one decoder block for one batch elem.
# ----------------------------------------------------------------------------
def fused_decoder_kernel(x_ref, pos_ref,
                         ln1_g_ref, ln1_b_ref,
                         wq_ref, bq_ref, wk_ref, bk_ref, wv_ref, bv_ref,
                         wo_ref, bo_ref,
                         ln2_g_ref, ln2_b_ref,
                         w1_ref, b1_ref, w2_ref, b2_ref,
                         lnf_g_ref, lnf_b_ref, head_w_ref, head_b_ref,
                         logits_ref, attn_ref,
                         h_ref,
                         *, num_heads, compute_dtype):
    l = pl.program_id(1)
    num_layers = pl.num_programs(1)

    S, D = h_ref.shape
    H = num_heads
    Dh = D // H
    eps = 1e-5
    cdt = compute_dtype

    @pl.when(l == 0)
    def _init():
        # Fold token-embedding + positional-embedding add into the first step;
        # the activation then lives in VMEM scratch for the whole layer stack.
        h_ref[...] = x_ref[0] + pos_ref[...]

    x = h_ref[...]                                            # (S, D)

    def layernorm(v, g, b):
        mu = jnp.mean(v, axis=-1, keepdims=True)
        var = jnp.mean((v - mu) ** 2, axis=-1, keepdims=True)
        return (v - mu) * jax.lax.rsqrt(var + eps) * g + b

    def mm(a, w):        # 2-D matmul on the MXU, f32 accumulate
        return jnp.dot(a.astype(cdt), w.astype(cdt),
                       preferred_element_type=jnp.float32)

    def bmm(eq, a, b):   # leading-batch batched matmul (all heads at once)
        return jnp.einsum(eq, a.astype(cdt), b.astype(cdt),
                          preferred_element_type=jnp.float32)

    # --- pre-norm multi-head self attention (all heads in one contraction) ----
    xn = layernorm(x, ln1_g_ref[0], ln1_b_ref[0])
    xnh = jnp.broadcast_to(xn[None], (H, S, D))               # hoisted, reused 3x

    q = bmm("hsd,hdf->hsf", xnh, wq_ref[0]) + bq_ref[0]       # (H, S, Dh)
    k = bmm("hsd,hdf->hsf", xnh, wk_ref[0]) + bk_ref[0]       # (H, S, Dh)
    v = bmm("hsd,hdf->hsf", xnh, wv_ref[0]) + bv_ref[0]       # (H, S, Dh)

    scale = 1.0 / (Dh ** 0.5)
    s = bmm("hqd,hkd->hqk", q, k) * scale                     # (H, S, S)

    # Causal mask (True = keep), matches ~torch.triu(ones, diagonal=1).
    # Built once per grid step (layers are a grid axis, not an in-kernel loop).
    row = jax.lax.broadcasted_iota(jnp.int32, (S, S), 0)
    col = jax.lax.broadcasted_iota(jnp.int32, (S, S), 1)
    keep = row >= col

    s = jnp.where(keep, s, -1e30)
    s = s - jnp.max(s, axis=-1, keepdims=True)
    e = jnp.exp(s)
    p = e / jnp.sum(e, axis=-1, keepdims=True)                # exact divide (keeps tight tol)
    attn_ref[0, 0] = p                                        # single (H,S,S) store per step

    ctx = bmm("hqk,hkd->hqd", p, v)                           # (H, S, Dh)
    att = bmm("hsd,hdf->hsf", ctx, wo_ref[0])                 # per-head output projection
    att = jnp.sum(att, axis=0) + bo_ref[0] + x                # combine heads + bias + residual

    # --- pre-norm feed forward ------------------------------------------------
    yn = layernorm(att, ln2_g_ref[0], ln2_b_ref[0])
    h1 = jnp.maximum(mm(yn, w1_ref[0]) + b1_ref[0], 0.0)      # relu
    ff = mm(h1, w2_ref[0]) + b2_ref[0]
    new_x = ff + att                                          # residual 2

    h_ref[...] = new_x                                        # carry to next layer step

    # --- final LayerNorm + lm_head folded into the last layer step ------------
    @pl.when(l == num_layers - 1)
    def _head():
        zn = layernorm(new_x, lnf_g_ref[...], lnf_b_ref[...])
        logits_ref[0] = mm(zn, head_w_ref[...]) + head_b_ref[...]   # lane-dense (S, V)


# ----------------------------------------------------------------------------
# Wrapper: packs per-layer weights (stack along L, split per head) and calls the
# single fused pallas_call.  Token-embedding gather stays in plain-JAX glue.
# ----------------------------------------------------------------------------
def decoder_forward(tokens, params, num_heads, compute_dtype=jnp.float32):
    B, S = tokens.shape
    D = params["tok_emb"].shape[1]
    V = params["head_w"].shape[1]
    layers = params["layers"]
    L = len(layers)
    H = num_heads
    Dh = D // H
    F = layers[0]["w1"].shape[1]

    x_emb = jnp.take(params["tok_emb"], tokens, axis=0)       # (B, S, D) gather (glue)
    pos = params["pos_emb"][:S]                               # (S, D)

    def stack(name):
        return jnp.stack([lp[name] for lp in layers], axis=0)

    # Pre-reshape QKV/O weights per head so the kernel never slices lanes.
    wq = stack("wq").reshape(L, D, H, Dh).transpose(0, 2, 1, 3)   # (L, H, D, Dh)
    wk = stack("wk").reshape(L, D, H, Dh).transpose(0, 2, 1, 3)
    wv = stack("wv").reshape(L, D, H, Dh).transpose(0, 2, 1, 3)
    wo = stack("wo").reshape(L, H, Dh, D)                         # (L, H, Dh, D)
    bq = stack("bq").reshape(L, H, 1, Dh)
    bk = stack("bk").reshape(L, H, 1, Dh)
    bv = stack("bv").reshape(L, H, 1, Dh)
    bo = stack("bo").reshape(L, 1, D)
    ln1_g = stack("ln1_g").reshape(L, 1, D)
    ln1_b = stack("ln1_b").reshape(L, 1, D)
    ln2_g = stack("ln2_g").reshape(L, 1, D)
    ln2_b = stack("ln2_b").reshape(L, 1, D)
    w1 = stack("w1")                                              # (L, D, F)
    b1 = stack("b1").reshape(L, 1, F)
    w2 = stack("w2")                                              # (L, F, D)
    b2 = stack("b2").reshape(L, 1, D)

    layer_args = [ln1_g, ln1_b, wq, bq, wk, bk, wv, bv, wo, bo,
                  ln2_g, ln2_b, w1, b1, w2, b2]
    head_args = [params["lnf_g"], params["lnf_b"],
                 params["head_w"], params["head_b"]]

    def layer_spec(a):                    # select layer l along the stacked axis
        nd = a.ndim
        return pl.BlockSpec((1,) + a.shape[1:],
                            lambda b, l, _nd=nd: (l,) + (0,) * (_nd - 1))

    def const_spec(a):                    # same block every step -> fetched once
        nd = a.ndim
        return pl.BlockSpec(a.shape, lambda b, l, _nd=nd: (0,) * _nd)

    in_specs = ([pl.BlockSpec((1, S, D), lambda b, l: (b, 0, 0)),   # gathered embeddings
                 const_spec(pos)]
                + [layer_spec(a) for a in layer_args]
                + [const_spec(a) for a in head_args])

    out_shapes = (jax.ShapeDtypeStruct((B, S, V), jnp.float32),
                  jax.ShapeDtypeStruct((B, L, H, S, S), jnp.float32))
    out_specs = (pl.BlockSpec((1, S, V), lambda b, l: (b, 0, 0)),          # written at l == L-1
                 pl.BlockSpec((1, 1, H, S, S), lambda b, l: (b, l, 0, 0, 0)))

    logits, attn = pl.pallas_call(
        functools.partial(fused_decoder_kernel,
                          num_heads=H, compute_dtype=compute_dtype),
        out_shape=out_shapes,
        grid=(B, L),
        in_specs=in_specs,
        out_specs=out_specs,
        scratch_shapes=[pltpu.VMEM((S, D), jnp.float32)],     # activation carried across layers
        compiler_params=pltpu.CompilerParams(
            dimension_semantics=("parallel", "arbitrary")),
    )(x_emb, pos, *layer_args, *head_args)

    attn_maps = [attn[:, li] for li in range(L)]              # list of (B, H, S, S)
    return logits, attn_maps


# ----------------------------------------------------------------------------
# Parameter construction (deterministic, synthetic).
# ----------------------------------------------------------------------------
def init_params(key, seq_len, vocab_size, d_model, d_ff, num_layers):
    scale = 0.02

    def normal(k, shape):
        return scale * jax.random.normal(k, shape, dtype=jnp.float32)

    keys = jax.random.split(key, 6 + num_layers)
    params = {
        "tok_emb": normal(keys[0], (vocab_size, d_model)),
        "pos_emb": normal(keys[1], (seq_len, d_model)),       # learned positional embedding
        "lnf_g": 1.0 + 0.1 * normal(keys[3], (1, d_model)),
        "lnf_b": 0.1 * normal(keys[4], (1, d_model)),
        "head_w": normal(keys[2], (d_model, vocab_size)),
        "head_b": normal(keys[5], (1, vocab_size)),
        "layers": [],
    }
    for li in range(num_layers):
        lk = jax.random.split(keys[6 + li], 14)
        layer = {
            "ln1_g": 1.0 + 0.1 * normal(lk[6], (1, d_model)),
            "ln1_b": 0.1 * normal(lk[7], (1, d_model)),
            "ln2_g": 1.0 + 0.1 * normal(lk[8], (1, d_model)),
            "ln2_b": 0.1 * normal(lk[9], (1, d_model)),
            "wq": normal(lk[0], (d_model, d_model)),
            "wk": normal(lk[1], (d_model, d_model)),
            "wv": normal(lk[2], (d_model, d_model)),
            "wo": normal(lk[3], (d_model, d_model)),
            "bq": normal(lk[10], (1, d_model)),
            "bk": normal(lk[11], (1, d_model)),
            "bv": normal(lk[12], (1, d_model)),
            "bo": normal(lk[13], (1, d_model)),
            "w1": normal(lk[4], (d_model, d_ff)),
            "b1": jnp.zeros((1, d_ff), jnp.float32),
            "w2": normal(lk[5], (d_ff, d_model)),
            "b2": jnp.zeros((1, d_model), jnp.float32),
        }
        params["layers"].append(layer)
    return params


# ----------------------------------------------------------------------------
# Pure-JAX reference for verification.
# ----------------------------------------------------------------------------
def reference_forward(tokens, params, num_heads):
    B, S = tokens.shape
    D = params["tok_emb"].shape[1]
    Dh = D // num_heads
    eps = 1e-5

    def ln(v, g, b):
        mu = jnp.mean(v, -1, keepdims=True)
        var = jnp.mean((v - mu) ** 2, -1, keepdims=True)
        return (v - mu) / jnp.sqrt(var + eps) * g + b

    x = jnp.take(params["tok_emb"], tokens, axis=0) + params["pos_emb"][None, :S, :]
    keep = jnp.tril(jnp.ones((S, S), bool))
    maps = []
    for p in params["layers"]:
        xn = ln(x, p["ln1_g"], p["ln1_b"])
        q = xn @ p["wq"] + p["bq"]
        k = xn @ p["wk"] + p["bk"]
        v = xn @ p["wv"] + p["bv"]
        q = q.reshape(B, S, num_heads, Dh).transpose(0, 2, 1, 3)
        k = k.reshape(B, S, num_heads, Dh).transpose(0, 2, 1, 3)
        v = v.reshape(B, S, num_heads, Dh).transpose(0, 2, 1, 3)
        s = jnp.einsum("bhqd,bhkd->bhqk", q, k) / jnp.sqrt(Dh)
        s = jnp.where(keep[None, None], s, -1e30)
        w = jax.nn.softmax(s, axis=-1)
        maps.append(w)
        ctx = jnp.einsum("bhqk,bhkd->bhqd", w, v).transpose(0, 2, 1, 3).reshape(B, S, D)
        att = ctx @ p["wo"] + p["bo"] + x
        yn = ln(att, p["ln2_g"], p["ln2_b"])
        ff = jnp.maximum(yn @ p["w1"] + p["b1"], 0.0) @ p["w2"] + p["b2"]
        x = ff + att
    xn = ln(x, params["lnf_g"], params["lnf_b"])
    return xn @ params["head_w"] + params["head_b"], maps


if __name__ == "__main__":
    # Small shapes consistent with the module's forward.
    B, S = 2, 8
    vocab_size = 128
    d_model = 32
    d_ff = 64
    num_layers = 4
    num_heads = 2

    key = jax.random.PRNGKey(0)
    pkey, tkey = jax.random.split(key)
    params = init_params(pkey, S, vocab_size, d_model, d_ff, num_layers)
    tokens = jax.random.randint(tkey, (B, S), 0, vocab_size, dtype=jnp.int32)

    # Default compute_dtype=f32 preserves the PyTorch module's numerics exactly.
    # On v6e/v7x pass compute_dtype=jnp.bfloat16 for the fast MXU path (loosen tolerances).
    logits, attn_maps = decoder_forward(tokens, params, num_heads)
    logits = jax.block_until_ready(logits)
    attn_maps = [jax.block_until_ready(a) for a in attn_maps]

    ref_logits, ref_maps = reference_forward(tokens, params, num_heads)
    assert logits.shape == (B, S, vocab_size)
    assert all(a.shape == (B, num_heads, S, S) for a in attn_maps)
    assert jnp.allclose(logits, ref_logits, atol=1e-4, rtol=1e-4)
    for a, r in zip(attn_maps, ref_maps):
        assert jnp.allclose(a, r, atol=1e-5, rtol=1e-4)

    print("KERNEL_OK")
</pallas_src>

<mosaic_0001>
module attributes {stable_mosaic.version = 11 : i64} {
  func.func @fused_decoder_kernel(%arg0: i32, %arg1: i32, %arg2: memref<1x8x32xf32, #tpu.memory_space<vmem>>, %arg3: memref<8x32xf32, #tpu.memory_space<vmem>>, %arg4: memref<1x1x32xf32, #tpu.memory_space<vmem>>, %arg5: memref<1x1x32xf32, #tpu.memory_space<vmem>>, %arg6: memref<1x2x32x16xf32, #tpu.memory_space<vmem>>, %arg7: memref<1x2x1x16xf32, #tpu.memory_space<vmem>>, %arg8: memref<1x2x32x16xf32, #tpu.memory_space<vmem>>, %arg9: memref<1x2x1x16xf32, #tpu.memory_space<vmem>>, %arg10: memref<1x2x32x16xf32, #tpu.memory_space<vmem>>, %arg11: memref<1x2x1x16xf32, #tpu.memory_space<vmem>>, %arg12: memref<1x2x16x32xf32, #tpu.memory_space<vmem>>, %arg13: memref<1x1x32xf32, #tpu.memory_space<vmem>>, %arg14: memref<1x1x32xf32, #tpu.memory_space<vmem>>, %arg15: memref<1x1x32xf32, #tpu.memory_space<vmem>>, %arg16: memref<1x32x64xf32, #tpu.memory_space<vmem>>, %arg17: memref<1x1x64xf32, #tpu.memory_space<vmem>>, %arg18: memref<1x64x32xf32, #tpu.memory_space<vmem>>, %arg19: memref<1x1x32xf32, #tpu.memory_space<vmem>>, %arg20: memref<1x32xf32, #tpu.memory_space<vmem>>, %arg21: memref<1x32xf32, #tpu.memory_space<vmem>>, %arg22: memref<32x128xf32, #tpu.memory_space<vmem>>, %arg23: memref<1x128xf32, #tpu.memory_space<vmem>>, %arg24: memref<1x8x128xf32, #tpu.memory_space<vmem>>, %arg25: memref<1x1x2x8x8xf32, #tpu.memory_space<vmem>>, %arg26: memref<8x32xf32, #tpu.memory_space<vmem>>) attributes {dimension_semantics = [#tpu.dimension_semantics<parallel>, #tpu.dimension_semantics<arbitrary>], iteration_bounds = array<i64: 2, 4>, scalar_prefetch = 0 : i64, scratch_operands = 1 : i64, tpu.core_type = #tpu.core_type<tc>, window_params = [{transform_indices = @transform_0, window_bounds = array<i64: 1, 8, 32>}, {pipeline_mode = #tpu.pipeline_mode<synchronous>, transform_indices = @transform_1, window_bounds = array<i64: 8, 32>}, {transform_indices = @transform_2, window_bounds = array<i64: 1, 1, 32>}, {transform_indices = @transform_3, window_bounds = array<i64: 1, 1, 32>}, {transform_indices = @transform_4, window_bounds = array<i64: 1, 2, 32, 16>}, {transform_indices = @transform_5, window_bounds = array<i64: 1, 2, 1, 16>}, {transform_indices = @transform_6, window_bounds = array<i64: 1, 2, 32, 16>}, {transform_indices = @transform_7, window_bounds = array<i64: 1, 2, 1, 16>}, {transform_indices = @transform_8, window_bounds = array<i64: 1, 2, 32, 16>}, {transform_indices = @transform_9, window_bounds = array<i64: 1, 2, 1, 16>}, {transform_indices = @transform_10, window_bounds = array<i64: 1, 2, 16, 32>}, {transform_indices = @transform_11, window_bounds = array<i64: 1, 1, 32>}, {transform_indices = @transform_12, window_bounds = array<i64: 1, 1, 32>}, {transform_indices = @transform_13, window_bounds = array<i64: 1, 1, 32>}, {transform_indices = @transform_14, window_bounds = array<i64: 1, 32, 64>}, {transform_indices = @transform_15, window_bounds = array<i64: 1, 1, 64>}, {transform_indices = @transform_16, window_bounds = array<i64: 1, 64, 32>}, {transform_indices = @transform_17, window_bounds = array<i64: 1, 1, 32>}, {pipeline_mode = #tpu.pipeline_mode<synchronous>, transform_indices = @transform_18, window_bounds = array<i64: 1, 32>}, {pipeline_mode = #tpu.pipeline_mode<synchronous>, transform_indices = @transform_19, window_bounds = array<i64: 1, 32>}, {pipeline_mode = #tpu.pipeline_mode<synchronous>, transform_indices = @transform_20, window_bounds = array<i64: 32, 128>}, {pipeline_mode = #tpu.pipeline_mode<synchronous>, transform_indices = @transform_21, window_bounds = array<i64: 1, 128>}, {transform_indices = @transform_22, window_bounds = array<i64: 1, 8, 128>}, {transform_indices = @transform_23, window_bounds = array<i64: 1, 1, 2, 8, 8>}]} {
    %c0_i32 = arith.constant 0 : i32
    %0 = arith.cmpi eq, %arg1, %c0_i32 : i32
    %1 = arith.extui %0 : i1 to i32
    %c0_i32_0 = arith.constant 0 : i32
    %2 = arith.cmpi ne, %1, %c0_i32_0 : i32
    scf.if %2 {
      %c0_88 = arith.constant 0 : index
      %c0_89 = arith.constant 0 : index
      %c0_90 = arith.constant 0 : index
      %133 = vector.load %arg2[%c0_88, %c0_89, %c0_90] : memref<1x8x32xf32, #tpu.memory_space<vmem>>, vector<1x8x32xf32>
      %134 = vector.shape_cast %133 : vector<1x8x32xf32> to vector<8x32xf32>
      %c0_91 = arith.constant 0 : index
      %c0_92 = arith.constant 0 : index
      %135 = vector.load %arg3[%c0_91, %c0_92] : memref<8x32xf32, #tpu.memory_space<vmem>>, vector<8x32xf32>
      %136 = arith.addf %134, %135 : vector<8x32xf32>
      %c0_93 = arith.constant 0 : index
      %c0_94 = arith.constant 0 : index
      %137 = vector.load %arg26[%c0_93, %c0_94] : memref<8x32xf32, #tpu.memory_space<vmem>>, vector<8x32xf32>
      tpu.vector_store %arg26[%c0_93, %c0_94], %136 {strides = array<i32>} : memref<8x32xf32, #tpu.memory_space<vmem>>, vector<8x32xf32>,
    } else {
    }
    %c0 = arith.constant 0 : index
    %c0_1 = arith.constant 0 : index
    %3 = vector.load %arg26[%c0, %c0_1] : memref<8x32xf32, #tpu.memory_space<vmem>>, vector<8x32xf32>
    %c0_2 = arith.constant 0 : index
    %c0_3 = arith.constant 0 : index
    %c0_4 = arith.constant 0 : index
    %4 = vector.load %arg4[%c0_2, %c0_3, %c0_4] : memref<1x1x32xf32, #tpu.memory_space<vmem>>, vector<1x1x32xf32>
    %5 = vector.shape_cast %4 : vector<1x1x32xf32> to vector<1x32xf32>
    %c0_5 = arith.constant 0 : index
    %c0_6 = arith.constant 0 : index
    %c0_7 = arith.constant 0 : index
    %6 = vector.load %arg5[%c0_5, %c0_6, %c0_7] : memref<1x1x32xf32, #tpu.memory_space<vmem>>, vector<1x1x32xf32>
    %7 = vector.shape_cast %6 : vector<1x1x32xf32> to vector<1x32xf32>
    %cst = arith.constant dense<0.000000e+00> : vector<8xf32>
    %8 = vector.multi_reduction <add>, %3, %cst [1] : vector<8x32xf32> to vector<8xf32>
    %9 = vector.shape_cast %8 : vector<8xf32> to vector<8x1xf32>
    %cst_8 = arith.constant 3.200000e+01 : f32
    %10 = vector.broadcast %cst_8 : f32 to vector<8x1xf32>
    %11 = arith.divf %9, %10 : vector<8x1xf32>
    %12 = vector.broadcast %11 : vector<8x1xf32> to vector<8x32xf32>
    %13 = arith.subf %3, %12 : vector<8x32xf32>
    %14 = arith.mulf %13, %13 : vector<8x32xf32>
    %cst_9 = arith.constant dense<0.000000e+00> : vector<8xf32>
    %15 = vector.multi_reduction <add>, %14, %cst_9 [1] : vector<8x32xf32> to vector<8xf32>
    %16 = vector.shape_cast %15 : vector<8xf32> to vector<8x1xf32>
    %cst_10 = arith.constant 3.200000e+01 : f32
    %17 = vector.broadcast %cst_10 : f32 to vector<8x1xf32>
    %18 = arith.divf %16, %17 : vector<8x1xf32>
    %19 = vector.broadcast %11 : vector<8x1xf32> to vector<8x32xf32>
    %20 = arith.subf %3, %19 : vector<8x32xf32>
    %cst_11 = arith.constant 9.99999974E-6 : f32
    %21 = vector.broadcast %cst_11 : f32 to vector<8x1xf32>
    %22 = arith.addf %18, %21 : vector<8x1xf32>
    %23 = math.rsqrt %22 : vector<8x1xf32>
    %24 = vector.broadcast %23 : vector<8x1xf32> to vector<8x32xf32>
    %25 = arith.mulf %20, %24 : vector<8x32xf32>
    %26 = vector.broadcast %5 : vector<1x32xf32> to vector<8x32xf32>
    %27 = arith.mulf %25, %26 : vector<8x32xf32>
    %28 = vector.broadcast %7 : vector<1x32xf32> to vector<8x32xf32>
    %29 = arith.addf %27, %28 : vector<8x32xf32>
    %30 = vector.shape_cast %29 : vector<8x32xf32> to vector<1x8x32xf32>
    %31 = vector.shape_cast %30 : vector<1x8x32xf32> to vector<1x8x32xf32>
    %32 = vector.broadcast %31 : vector<1x8x32xf32> to vector<2x8x32xf32>
    %c0_12 = arith.constant 0 : index
    %c0_13 = arith.constant 0 : index
    %c0_14 = arith.constant 0 : index
    %c0_15 = arith.constant 0 : index
    %33 = vector.load %arg6[%c0_12, %c0_13, %c0_14, %c0_15] : memref<1x2x32x16xf32, #tpu.memory_space<vmem>>, vector<1x2x32x16xf32>
    %34 = vector.shape_cast %33 : vector<1x2x32x16xf32> to vector<2x32x16xf32>
    "tpu.trace_start"() <{level = 10 : i32, message = "hsd,hdf->hsf"}> : () -> ()
    %cst_16 = arith.constant dense<0.000000e+00> : vector<2x8x16xf32>
    %35 = tpu.matmul %32, %34, %cst_16 {dimension_numbers = #tpu.dot_dimension_numbers<[2], [1], [1], [2], [0, 0, 0, 1, 1, 2], [0], [0]>} : vector<2x8x32xf32>, vector<2x32x16xf32>, vector<2x8x16xf32> -> vector<2x8x16xf32>
    "tpu.trace_stop"() : () -> ()
    %c0_17 = arith.constant 0 : index
    %c0_18 = arith.constant 0 : index
    %c0_19 = arith.constant 0 : index
    %c0_20 = arith.constant 0 : index
    %36 = vector.load %arg7[%c0_17, %c0_18, %c0_19, %c0_20] : memref<1x2x1x16xf32, #tpu.memory_space<vmem>>, vector<1x2x1x16xf32>
    %37 = vector.shape_cast %36 : vector<1x2x1x16xf32> to vector<2x1x16xf32>
    %38 = vector.broadcast %37 : vector<2x1x16xf32> to vector<2x8x16xf32>
    %39 = arith.addf %35, %38 : vector<2x8x16xf32>
    %c0_21 = arith.constant 0 : index
    %c0_22 = arith.constant 0 : index
    %c0_23 = arith.constant 0 : index
    %c0_24 = arith.constant 0 : index
    %40 = vector.load %arg8[%c0_21, %c0_22, %c0_23, %c0_24] : memref<1x2x32x16xf32, #tpu.memory_space<vmem>>, vector<1x2x32x16xf32>
    %41 = vector.shape_cast %40 : vector<1x2x32x16xf32> to vector<2x32x16xf32>
    "tpu.trace_start"() <{level = 10 : i32, message = "hsd,hdf->hsf"}> : () -> ()
    %cst_25 = arith.constant dense<0.000000e+00> : vector<2x8x16xf32>
    %42 = tpu.matmul %32, %41, %cst_25 {dimension_numbers = #tpu.dot_dimension_numbers<[2], [1], [1], [2], [0, 0, 0, 1, 1, 2], [0], [0]>} : vector<2x8x32xf32>, vector<2x32x16xf32>, vector<2x8x16xf32> -> vector<2x8x16xf32>
    "tpu.trace_stop"() : () -> ()
    %c0_26 = arith.constant 0 : index
    %c0_27 = arith.constant 0 : index
    %c0_28 = arith.constant 0 : index
    %c0_29 = arith.constant 0 : index
    %43 = vector.load %arg9[%c0_26, %c0_27, %c0_28, %c0_29] : memref<1x2x1x16xf32, #tpu.memory_space<vmem>>, vector<1x2x1x16xf32>
    %44 = vector.shape_cast %43 : vector<1x2x1x16xf32> to vector<2x1x16xf32>
    %45 = vector.broadcast %44 : vector<2x1x16xf32> to vector<2x8x16xf32>
    %46 = arith.addf %42, %45 : vector<2x8x16xf32>
    %c0_30 = arith.constant 0 : index
    %c0_31 = arith.constant 0 : index
    %c0_32 = arith.constant 0 : index
    %c0_33 = arith.constant 0 : index
    %47 = vector.load %arg10[%c0_30, %c0_31, %c0_32, %c0_33] : memref<1x2x32x16xf32, #tpu.memory_space<vmem>>, vector<1x2x32x16xf32>
    %48 = vector.shape_cast %47 : vector<1x2x32x16xf32> to vector<2x32x16xf32>
    "tpu.trace_start"() <{level = 10 : i32, message = "hsd,hdf->hsf"}> : () -> ()
    %cst_34 = arith.constant dense<0.000000e+00> : vector<2x8x16xf32>
    %49 = tpu.matmul %32, %48, %cst_34 {dimension_numbers = #tpu.dot_dimension_numbers<[2], [1], [1], [2], [0, 0, 0, 1, 1, 2], [0], [0]>} : vector<2x8x32xf32>, vector<2x32x16xf32>, vector<2x8x16xf32> -> vector<2x8x16xf32>
    "tpu.trace_stop"() : () -> ()
    %c0_35 = arith.constant 0 : index
    %c0_36 = arith.constant 0 : index
    %c0_37 = arith.constant 0 : index
    %c0_38 = arith.constant 0 : index
    %50 = vector.load %arg11[%c0_35, %c0_36, %c0_37, %c0_38] : memref<1x2x1x16xf32, #tpu.memory_space<vmem>>, vector<1x2x1x16xf32>
    %51 = vector.shape_cast %50 : vector<1x2x1x16xf32> to vector<2x1x16xf32>
    %52 = vector.broadcast %51 : vector<2x1x16xf32> to vector<2x8x16xf32>
    %53 = arith.addf %49, %52 : vector<2x8x16xf32>
    "tpu.trace_start"() <{level = 10 : i32, message = "hqd,hkd->hqk"}> : () -> ()
    %cst_39 = arith.constant dense<0.000000e+00> : vector<2x8x8xf32>
    %54 = tpu.matmul %39, %46, %cst_39 {dimension_numbers = #tpu.dot_dimension_numbers<[2], [2], [1], [1], [0, 0, 0, 1, 1, 1], [0], [0]>} : vector<2x8x16xf32>, vector<2x8x16xf32>, vector<2x8x8xf32> -> vector<2x8x8xf32>
    "tpu.trace_stop"() : () -> ()
    %cst_40 = arith.constant 2.500000e-01 : f32
    %55 = vector.broadcast %cst_40 : f32 to vector<2x8x8xf32>
    %56 = arith.mulf %54, %55 : vector<2x8x8xf32>
    %57 = tpu.iota {dimensions = array<i32: 0>} : vector<8x8xi32>
    %58 = tpu.iota {dimensions = array<i32: 1>} : vector<8x8xi32>
    %59 = arith.cmpi sge, %57, %58 : vector<8x8xi32>
    %cst_41 = arith.constant -1.000000e+30 : f32
    %60 = vector.shape_cast %59 : vector<8x8xi1> to vector<1x8x8xi1>
    %61 = vector.broadcast %60 : vector<1x8x8xi1> to vector<2x8x8xi1>
    %62 = vector.broadcast %cst_41 : f32 to vector<2x8x8xf32>
    %63 = arith.select %61, %56, %62 : vector<2x8x8xi1>, vector<2x8x8xf32>
    %cst_42 = arith.constant dense<0xFF800000> : vector<2x8xf32>
    %64 = vector.multi_reduction <maximumf>, %63, %cst_42 [2] : vector<2x8x8xf32> to vector<2x8xf32>
    %65 = vector.shape_cast %64 : vector<2x8xf32> to vector<2x8x1xf32>
    %66 = vector.broadcast %65 : vector<2x8x1xf32> to vector<2x8x8xf32>
    %67 = arith.subf %63, %66 : vector<2x8x8xf32>
    %68 = math.exp %67 : vector<2x8x8xf32>
    %cst_43 = arith.constant dense<0.000000e+00> : vector<2x8xf32>
    %69 = vector.multi_reduction <add>, %68, %cst_43 [2] : vector<2x8x8xf32> to vector<2x8xf32>
    %70 = vector.shape_cast %69 : vector<2x8xf32> to vector<2x8x1xf32>
    %71 = vector.broadcast %70 : vector<2x8x1xf32> to vector<2x8x8xf32>
    %72 = arith.divf %68, %71 : vector<2x8x8xf32>
    %c0_44 = arith.constant 0 : index
    %c0_45 = arith.constant 0 : index
    %c0_46 = arith.constant 0 : index
    %c0_47 = arith.constant 0 : index
    %c0_48 = arith.constant 0 : index
    %73 = vector.load %arg25[%c0_44, %c0_45, %c0_46, %c0_47, %c0_48] : memref<1x1x2x8x8xf32, #tpu.memory_space<vmem>>, vector<1x1x2x8x8xf32>
    %74 = vector.shape_cast %73 : vector<1x1x2x8x8xf32> to vector<2x8x8xf32>
    %75 = vector.shape_cast %72 : vector<2x8x8xf32> to vector<1x1x2x8x8xf32>
    tpu.vector_store %arg25[%c0_44, %c0_45, %c0_46, %c0_47, %c0_48], %75 {strides = array<i32>} : memref<1x1x2x8x8xf32, #tpu.memory_space<vmem>>, vector<1x1x2x8x8xf32>,
    "tpu.trace_start"() <{level = 10 : i32, message = "hqk,hkd->hqd"}> : () -> ()
    %cst_49 = arith.constant dense<0.000000e+00> : vector<2x8x16xf32>
    %76 = tpu.matmul %72, %53, %cst_49 {dimension_numbers = #tpu.dot_dimension_numbers<[2], [1], [1], [2], [0, 0, 0, 1, 1, 2], [0], [0]>} : vector<2x8x8xf32>, vector<2x8x16xf32>, vector<2x8x16xf32> -> vector<2x8x16xf32>
    "tpu.trace_stop"() : () -> ()
    %c0_50 = arith.constant 0 : index
    %c0_51 = arith.constant 0 : index
    %c0_52 = arith.constant 0 : index
    %c0_53 = arith.constant 0 : index
    %77 = vector.load %arg12[%c0_50, %c0_51, %c0_52, %c0_53] : memref<1x2x16x32xf32, #tpu.memory_space<vmem>>, vector<1x2x16x32xf32>
    %78 = vector.shape_cast %77 : vector<1x2x16x32xf32> to vector<2x16x32xf32>
    "tpu.trace_start"() <{level = 10 : i32, message = "hsd,hdf->hsf"}> : () -> ()
    %cst_54 = arith.constant dense<0.000000e+00> : vector<2x8x32xf32>
    %79 = tpu.matmul %76, %78, %cst_54 {dimension_numbers = #tpu.dot_dimension_numbers<[2], [1], [1], [2], [0, 0, 0, 1, 1, 2], [0], [0]>} : vector<2x8x16xf32>, vector<2x16x32xf32>, vector<2x8x32xf32> -> vector<2x8x32xf32>
    "tpu.trace_stop"() : () -> ()
    %cst_55 = arith.constant dense<0.000000e+00> : vector<8x32xf32>
    %80 = vector.multi_reduction <add>, %79, %cst_55 [0] : vector<2x8x32xf32> to vector<8x32xf32>
    %c0_56 = arith.constant 0 : index
    %c0_57 = arith.constant 0 : index
    %c0_58 = arith.constant 0 : index
    %81 = vector.load %arg13[%c0_56, %c0_57, %c0_58] : memref<1x1x32xf32, #tpu.memory_space<vmem>>, vector<1x1x32xf32>
    %82 = vector.shape_cast %81 : vector<1x1x32xf32> to vector<1x32xf32>
    %83 = vector.broadcast %82 : vector<1x32xf32> to vector<8x32xf32>
    %84 = arith.addf %80, %83 : vector<8x32xf32>
    %85 = arith.addf %84, %3 : vector<8x32xf32>
    %c0_59 = arith.constant 0 : index
    %c0_60 = arith.constant 0 : index
    %c0_61 = arith.constant 0 : index
    %86 = vector.load %arg14[%c0_59, %c0_60, %c0_61] : memref<1x1x32xf32, #tpu.memory_space<vmem>>, vector<1x1x32xf32>
    %87 = vector.shape_cast %86 : vector<1x1x32xf32> to vector<1x32xf32>
    %c0_62 = arith.constant 0 : index
    %c0_63 = arith.constant 0 : index
    %c0_64 = arith.constant 0 : index
    %88 = vector.load %arg15[%c0_62, %c0_63, %c0_64] : memref<1x1x32xf32, #tpu.memory_space<vmem>>, vector<1x1x32xf32>
    %89 = vector.shape_cast %88 : vector<1x1x32xf32> to vector<1x32xf32>
    %cst_65 = arith.constant dense<0.000000e+00> : vector<8xf32>
    %90 = vector.multi_reduction <add>, %85, %cst_65 [1] : vector<8x32xf32> to vector<8xf32>
    %91 = vector.shape_cast %90 : vector<8xf32> to vector<8x1xf32>
    %cst_66 = arith.constant 3.200000e+01 : f32
    %92 = vector.broadcast %cst_66 : f32 to vector<8x1xf32>
    %93 = arith.divf %91, %92 : vector<8x1xf32>
    %94 = vector.broadcast %93 : vector<8x1xf32> to vector<8x32xf32>
    %95 = arith.subf %85, %94 : vector<8x32xf32>
    %96 = arith.mulf %95, %95 : vector<8x32xf32>
    %cst_67 = arith.constant dense<0.000000e+00> : vector<8xf32>
    %97 = vector.multi_reduction <add>, %96, %cst_67 [1] : vector<8x32xf32> to vector<8xf32>
    %98 = vector.shape_cast %97 : vector<8xf32> to vector<8x1xf32>
    %cst_68 = arith.constant 3.200000e+01 : f32
    %99 = vector.broadcast %cst_68 : f32 to vector<8x1xf32>
    %100 = arith.divf %98, %99 : vector<8x1xf32>
    %101 = vector.broadcast %93 : vector<8x1xf32> to vector<8x32xf32>
    %102 = arith.subf %85, %101 : vector<8x32xf32>
    %cst_69 = arith.constant 9.99999974E-6 : f32
    %103 = vector.broadcast %cst_69 : f32 to vector<8x1xf32>
    %104 = arith.addf %100, %103 : vector<8x1xf32>
    %105 = math.rsqrt %104 : vector<8x1xf32>
    %106 = vector.broadcast %105 : vector<8x1xf32> to vector<8x32xf32>
    %107 = arith.mulf %102, %106 : vector<8x32xf32>
    %108 = vector.broadcast %87 : vector<1x32xf32> to vector<8x32xf32>
    %109 = arith.mulf %107, %108 : vector<8x32xf32>
    %110 = vector.broadcast %89 : vector<1x32xf32> to vector<8x32xf32>
    %111 = arith.addf %109, %110 : vector<8x32xf32>
    %c0_70 = arith.constant 0 : index
    %c0_71 = arith.constant 0 : index
    %c0_72 = arith.constant 0 : index
    %112 = vector.load %arg16[%c0_70, %c0_71, %c0_72] : memref<1x32x64xf32, #tpu.memory_space<vmem>>, vector<1x32x64xf32>
    %113 = vector.shape_cast %112 : vector<1x32x64xf32> to vector<32x64xf32>
    %cst_73 = arith.constant dense<0.000000e+00> : vector<8x64xf32>
    %114 = tpu.matmul %111, %113, %cst_73 {dimension_numbers = #tpu.dot_dimension_numbers<[1], [0], [0], [1], [0, 0, 1, 1], [], []>} : vector<8x32xf32>, vector<32x64xf32>, vector<8x64xf32> -> vector<8x64xf32>
    %c0_74 = arith.constant 0 : index
    %c0_75 = arith.constant 0 : index
    %c0_76 = arith.constant 0 : index
    %115 = vector.load %arg17[%c0_74, %c0_75, %c0_76] : memref<1x1x64xf32, #tpu.memory_space<vmem>>, vector<1x1x64xf32>
    %116 = vector.shape_cast %115 : vector<1x1x64xf32> to vector<1x64xf32>
    %117 = vector.broadcast %116 : vector<1x64xf32> to vector<8x64xf32>
    %118 = arith.addf %114, %117 : vector<8x64xf32>
    %cst_77 = arith.constant 0.000000e+00 : f32
    %119 = vector.broadcast %cst_77 : f32 to vector<8x64xf32>
    %120 = arith.maximumf %118, %119 : vector<8x64xf32>
    %c0_78 = arith.constant 0 : index
    %c0_79 = arith.constant 0 : index
    %c0_80 = arith.constant 0 : index
    %121 = vector.load %arg18[%c0_78, %c0_79, %c0_80] : memref<1x64x32xf32, #tpu.memory_space<vmem>>, vector<1x64x32xf32>
    %122 = vector.shape_cast %121 : vector<1x64x32xf32> to vector<64x32xf32>
    %cst_81 = arith.constant dense<0.000000e+00> : vector<8x32xf32>
    %123 = tpu.matmul %120, %122, %cst_81 {dimension_numbers = #tpu.dot_dimension_numbers<[1], [0], [0], [1], [0, 0, 1, 1], [], []>} : vector<8x64xf32>, vector<64x32xf32>, vector<8x32xf32> -> vector<8x32xf32>
    %c0_82 = arith.constant 0 : index
    %c0_83 = arith.constant 0 : index
    %c0_84 = arith.constant 0 : index
    %124 = vector.load %arg19[%c0_82, %c0_83, %c0_84] : memref<1x1x32xf32, #tpu.memory_space<vmem>>, vector<1x1x32xf32>
    %125 = vector.shape_cast %124 : vector<1x1x32xf32> to vector<1x32xf32>
    %126 = vector.broadcast %125 : vector<1x32xf32> to vector<8x32xf32>
    %127 = arith.addf %123, %126 : vector<8x32xf32>
    %128 = arith.addf %127, %85 : vector<8x32xf32>
    %c0_85 = arith.constant 0 : index
    %c0_86 = arith.constant 0 : index
    %129 = vector.load %arg26[%c0_85, %c0_86] : memref<8x32xf32, #tpu.memory_space<vmem>>, vector<8x32xf32>
    tpu.vector_store %arg26[%c0_85, %c0_86], %128 {strides = array<i32>} : memref<8x32xf32, #tpu.memory_space<vmem>>, vector<8x32xf32>,
    %c3_i32 = arith.constant 3 : i32
    %130 = arith.cmpi eq, %arg1, %c3_i32 : i32
    %131 = arith.extui %130 : i1 to i32
    %c0_i32_87 = arith.constant 0 : i32
    %132 = arith.cmpi ne, %131, %c0_i32_87 : i32
    scf.if %132 {
      %c0_88 = arith.constant 0 : index
      %c0_89 = arith.constant 0 : index
      %133 = vector.load %arg20[%c0_88, %c0_89] : memref<1x32xf32, #tpu.memory_space<vmem>>, vector<1x32xf32>
      %c0_90 = arith.constant 0 : index
      %c0_91 = arith.constant 0 : index
      %134 = vector.load %arg21[%c0_90, %c0_91] : memref<1x32xf32, #tpu.memory_space<vmem>>, vector<1x32xf32>
      %cst_92 = arith.constant dense<0.000000e+00> : vector<8xf32>
      %135 = vector.multi_reduction <add>, %128, %cst_92 [1] : vector<8x32xf32> to vector<8xf32>
      %136 = vector.shape_cast %135 : vector<8xf32> to vector<8x1xf32>
      %cst_93 = arith.constant 3.200000e+01 : f32
      %137 = vector.broadcast %cst_93 : f32 to vector<8x1xf32>
      %138 = arith.divf %136, %137 : vector<8x1xf32>
      %139 = vector.broadcast %138 : vector<8x1xf32> to vector<8x32xf32>
      %140 = arith.subf %128, %139 : vector<8x32xf32>
      %141 = arith.mulf %140, %140 : vector<8x32xf32>
      %cst_94 = arith.constant dense<0.000000e+00> : vector<8xf32>
      %142 = vector.multi_reduction <add>, %141, %cst_94 [1] : vector<8x32xf32> to vector<8xf32>
      %143 = vector.shape_cast %142 : vector<8xf32> to vector<8x1xf32>
      %cst_95 = arith.constant 3.200000e+01 : f32
      %144 = vector.broadcast %cst_95 : f32 to vector<8x1xf32>
      %145 = arith.divf %143, %144 : vector<8x1xf32>
      %146 = vector.broadcast %138 : vector<8x1xf32> to vector<8x32xf32>
      %147 = arith.subf %128, %146 : vector<8x32xf32>
      %cst_96 = arith.constant 9.99999974E-6 : f32
      %148 = vector.broadcast %cst_96 : f32 to vector<8x1xf32>
      %149 = arith.addf %145, %148 : vector<8x1xf32>
      %150 = math.rsqrt %149 : vector<8x1xf32>
      %151 = vector.broadcast %150 : vector<8x1xf32> to vector<8x32xf32>
      %152 = arith.mulf %147, %151 : vector<8x32xf32>
      %153 = vector.broadcast %133 : vector<1x32xf32> to vector<8x32xf32>
      %154 = arith.mulf %152, %153 : vector<8x32xf32>
      %155 = vector.broadcast %134 : vector<1x32xf32> to vector<8x32xf32>
      %156 = arith.addf %154, %155 : vector<8x32xf32>
      %c0_97 = arith.constant 0 : index
      %c0_98 = arith.constant 0 : index
      %157 = vector.load %arg22[%c0_97, %c0_98] : memref<32x128xf32, #tpu.memory_space<vmem>>, vector<32x128xf32>
      %cst_99 = arith.constant dense<0.000000e+00> : vector<8x128xf32>
      %158 = tpu.matmul %156, %157, %cst_99 {dimension_numbers = #tpu.dot_dimension_numbers<[1], [0], [0], [1], [0, 0, 1, 1], [], []>} : vector<8x32xf32>, vector<32x128xf32>, vector<8x128xf32> -> vector<8x128xf32>
      %c0_100 = arith.constant 0 : index
      %c0_101 = arith.constant 0 : index
      %159 = vector.load %arg23[%c0_100, %c0_101] : memref<1x128xf32, #tpu.memory_space<vmem>>, vector<1x128xf32>
      %160 = vector.broadcast %159 : vector<1x128xf32> to vector<8x128xf32>
      %161 = arith.addf %158, %160 : vector<8x128xf32>
      %c0_102 = arith.constant 0 : index
      %c0_103 = arith.constant 0 : index
      %c0_104 = arith.constant 0 : index
      %162 = vector.load %arg24[%c0_102, %c0_103, %c0_104] : memref<1x8x128xf32, #tpu.memory_space<vmem>>, vector<1x8x128xf32>
      %163 = vector.shape_cast %162 : vector<1x8x128xf32> to vector<8x128xf32>
      %164 = vector.shape_cast %161 : vector<8x128xf32> to vector<1x8x128xf32>
      tpu.vector_store %arg24[%c0_102, %c0_103, %c0_104], %164 {strides = array<i32>} : memref<1x8x128xf32, #tpu.memory_space<vmem>>, vector<1x8x128xf32>,
    } else {
    }
    return
  }
  func.func @transform_0(%arg0: i32, %arg1: i32) -> (i32, i32, i32) {
    %c0_i32 = arith.constant 0 : i32
    %c0_i32_0 = arith.constant 0 : i32
    %c0_i32_1 = arith.constant 0 : i32
    return %arg0, %c0_i32, %c0_i32_0 : i32, i32, i32
  }
  func.func @transform_1(%arg0: i32, %arg1: i32) -> (i32, i32) {
    %c0_i32 = arith.constant 0 : i32
    %c0_i32_0 = arith.constant 0 : i32
    %c0_i32_1 = arith.constant 0 : i32
    return %c0_i32, %c0_i32_0 : i32, i32
  }
  func.func @transform_2(%arg0: i32, %arg1: i32) -> (i32, i32, i32) {
    %c0_i32 = arith.constant 0 : i32
    %c0_i32_0 = arith.constant 0 : i32
    %c0_i32_1 = arith.constant 0 : i32
    return %arg1, %c0_i32, %c0_i32_0 : i32, i32, i32
  }
  func.func @transform_3(%arg0: i32, %arg1: i32) -> (i32, i32, i32) {
    %c0_i32 = arith.constant 0 : i32
    %c0_i32_0 = arith.constant 0 : i32
    %c0_i32_1 = arith.constant 0 : i32
    return %arg1, %c0_i32, %c0_i32_0 : i32, i32, i32
  }
  func.func @transform_4(%arg0: i32, %arg1: i32) -> (i32, i32, i32, i32) {
    %c0_i32 = arith.constant 0 : i32
    %c0_i32_0 = arith.constant 0 : i32
    %c0_i32_1 = arith.constant 0 : i32
    %c0_i32_2 = arith.constant 0 : i32
    return %arg1, %c0_i32, %c0_i32_0, %c0_i32_1 : i32, i32, i32, i32
  }
  func.func @transform_5(%arg0: i32, %arg1: i32) -> (i32, i32, i32, i32) {
    %c0_i32 = arith.constant 0 : i32
    %c0_i32_0 = arith.constant 0 : i32
    %c0_i32_1 = arith.constant 0 : i32
    %c0_i32_2 = arith.constant 0 : i32
    return %arg1, %c0_i32, %c0_i32_0, %c0_i32_1 : i32, i32, i32, i32
  }
  func.func @transform_6(%arg0: i32, %arg1: i32) -> (i32, i32, i32, i32) {
    %c0_i32 = arith.constant 0 : i32
    %c0_i32_0 = arith.constant 0 : i32
    %c0_i32_1 = arith.constant 0 : i32
    %c0_i32_2 = arith.constant 0 : i32
    return %arg1, %c0_i32, %c0_i32_0, %c0_i32_1 : i32, i32, i32, i32
  }
  func.func @transform_7(%arg0: i32, %arg1: i32) -> (i32, i32, i32, i32) {
    %c0_i32 = arith.constant 0 : i32
    %c0_i32_0 = arith.constant 0 : i32
    %c0_i32_1 = arith.constant 0 : i32
    %c0_i32_2 = arith.constant 0 : i32
    return %arg1, %c0_i32, %c0_i32_0, %c0_i32_1 : i32, i32, i32, i32
  }
  func.func @transform_8(%arg0: i32, %arg1: i32) -> (i32, i32, i32, i32) {
    %c0_i32 = arith.constant 0 : i32
    %c0_i32_0 = arith.constant 0 : i32
    %c0_i32_1 = arith.constant 0 : i32
    %c0_i32_2 = arith.constant 0 : i32
    return %arg1, %c0_i32, %c0_i32_0, %c0_i32_1 : i32, i32, i32, i32
  }
  func.func @transform_9(%arg0: i32, %arg1: i32) -> (i32, i32, i32, i32) {
    %c0_i32 = arith.constant 0 : i32
    %c0_i32_0 = arith.constant 0 : i32
    %c0_i32_1 = arith.constant 0 : i32
    %c0_i32_2 = arith.constant 0 : i32
    return %arg1, %c0_i32, %c0_i32_0, %c0_i32_1 : i32, i32, i32, i32
  }
  func.func @transform_10(%arg0: i32, %arg1: i32) -> (i32, i32, i32, i32) {
    %c0_i32 = arith.constant 0 : i32
    %c0_i32_0 = arith.constant 0 : i32
    %c0_i32_1 = arith.constant 0 : i32
    %c0_i32_2 = arith.constant 0 : i32
    return %arg1, %c0_i32, %c0_i32_0, %c0_i32_1 : i32, i32, i32, i32
  }
  func.func @transform_11(%arg0: i32, %arg1: i32) -> (i32, i32, i32) {
    %c0_i32 = arith.constant 0 : i32
    %c0_i32_0 = arith.constant 0 : i32
    %c0_i32_1 = arith.constant 0 : i32
    return %arg1, %c0_i32, %c0_i32_0 : i32, i32, i32
  }
  func.func @transform_12(%arg0: i32, %arg1: i32) -> (i32, i32, i32) {
    %c0_i32 = arith.constant 0 : i32
    %c0_i32_0 = arith.constant 0 : i32
    %c0_i32_1 = arith.constant 0 : i32
    return %arg1, %c0_i32, %c0_i32_0 : i32, i32, i32
  }
  func.func @transform_13(%arg0: i32, %arg1: i32) -> (i32, i32, i32) {
    %c0_i32 = arith.constant 0 : i32
    %c0_i32_0 = arith.constant 0 : i32
    %c0_i32_1 = arith.constant 0 : i32
    return %arg1, %c0_i32, %c0_i32_0 : i32, i32, i32
  }
  func.func @transform_14(%arg0: i32, %arg1: i32) -> (i32, i32, i32) {
    %c0_i32 = arith.constant 0 : i32
    %c0_i32_0 = arith.constant 0 : i32
    %c0_i32_1 = arith.constant 0 : i32
    return %arg1, %c0_i32, %c0_i32_0 : i32, i32, i32
  }
  func.func @transform_15(%arg0: i32, %arg1: i32) -> (i32, i32, i32) {
    %c0_i32 = arith.constant 0 : i32
    %c0_i32_0 = arith.constant 0 : i32
    %c0_i32_1 = arith.constant 0 : i32
    return %arg1, %c0_i32, %c0_i32_0 : i32, i32, i32
  }
  func.func @transform_16(%arg0: i32, %arg1: i32) -> (i32, i32, i32) {
    %c0_i32 = arith.constant 0 : i32
    %c0_i32_0 = arith.constant 0 : i32
    %c0_i32_1 = arith.constant 0 : i32
    return %arg1, %c0_i32, %c0_i32_0 : i32, i32, i32
  }
  func.func @transform_17(%arg0: i32, %arg1: i32) -> (i32, i32, i32) {
    %c0_i32 = arith.constant 0 : i32
    %c0_i32_0 = arith.constant 0 : i32
    %c0_i32_1 = arith.constant 0 : i32
    return %arg1, %c0_i32, %c0_i32_0 : i32, i32, i32
  }
  func.func @transform_18(%arg0: i32, %arg1: i32) -> (i32, i32) {
    %c0_i32 = arith.constant 0 : i32
    %c0_i32_0 = arith.constant 0 : i32
    %c0_i32_1 = arith.constant 0 : i32
    return %c0_i32, %c0_i32_0 : i32, i32
  }
  func.func @transform_19(%arg0: i32, %arg1: i32) -> (i32, i32) {
    %c0_i32 = arith.constant 0 : i32
    %c0_i32_0 = arith.constant 0 : i32
    %c0_i32_1 = arith.constant 0 : i32
    return %c0_i32, %c0_i32_0 : i32, i32
  }
  func.func @transform_20(%arg0: i32, %arg1: i32) -> (i32, i32) {
    %c0_i32 = arith.constant 0 : i32
    %c0_i32_0 = arith.constant 0 : i32
    %c0_i32_1 = arith.constant 0 : i32
    return %c0_i32, %c0_i32_0 : i32, i32
  }
  func.func @transform_21(%arg0: i32, %arg1: i32) -> (i32, i32) {
    %c0_i32 = arith.constant 0 : i32
    %c0_i32_0 = arith.constant 0 : i32
    %c0_i32_1 = arith.constant 0 : i32
    return %c0_i32, %c0_i32_0 : i32, i32
  }
  func.func @transform_22(%arg0: i32, %arg1: i32) -> (i32, i32, i32) {
    %c0_i32 = arith.constant 0 : i32
    %c0_i32_0 = arith.constant 0 : i32
    %c0_i32_1 = arith.constant 0 : i32
    return %arg0, %c0_i32, %c0_i32_0 : i32, i32, i32
  }
  func.func @transform_23(%arg0: i32, %arg1: i32) -> (i32, i32, i32, i32, i32) {
    %c0_i32 = arith.constant 0 : i32
    %c0_i32_0 = arith.constant 0 : i32
    %c0_i32_1 = arith.constant 0 : i32
    %c0_i32_2 = arith.constant 0 : i32
    return %arg0, %arg1, %c0_i32, %c0_i32_0, %c0_i32_1 : i32, i32, i32, i32, i32
  }
}

</mosaic_0001>

<llo_original>
// kernel: tpu_custom_call.1
$region0: #{tpu_custom_call.1}
  #allocation0 [shape = 'u32[]', space=smem, size = 0x4, offset = 0x4, fixed_abs, tag = 'smem constant byte address 0x4 - core index']
  #allocation1 [shape = 'u32[144,128]{1,0:T(1,128)}', space=vmem, size = 0x12000, scoped, tag = 'internal scratch']
  #allocation2 [shape = 'f32[8,32]{1,0:T(8,128)}', space=vmem, size = 0x1000, scoped, tag = 'scratch operand']
  %s0 = inlined_call_operand.vmem [shape: f32[2,8,32], index: 0, kind: input, shape index: {}]
  %s1 = inlined_call_operand.vmem [shape: f32[8,32], index: 1, kind: input, shape index: {}]
  %s2 = inlined_call_operand.vmem [shape: f32[4,1,32], index: 2, kind: input, shape index: {}]
  %s3 = inlined_call_operand.vmem [shape: f32[4,1,32], index: 3, kind: input, shape index: {}]
  %s4 = inlined_call_operand.vmem [shape: f32[4,2,32,16], index: 4, kind: input, shape index: {}]
  %s5 = inlined_call_operand.vmem [shape: f32[4,2,1,16], index: 5, kind: input, shape index: {}]
  %s6 = inlined_call_operand.vmem [shape: f32[4,2,32,16], index: 6, kind: input, shape index: {}]
  %s7 = inlined_call_operand.vmem [shape: f32[4,2,1,16], index: 7, kind: input, shape index: {}]
  %s8 = inlined_call_operand.vmem [shape: f32[4,2,32,16], index: 8, kind: input, shape index: {}]
  %s9 = inlined_call_operand.vmem [shape: f32[4,2,1,16], index: 9, kind: input, shape index: {}]
  %s10 = inlined_call_operand.vmem [shape: f32[4,2,16,32], index: 10, kind: input, shape index: {}]
  %s11 = inlined_call_operand.vmem [shape: f32[4,1,32], index: 11, kind: input, shape index: {}]
  %s12 = inlined_call_operand.vmem [shape: f32[4,1,32], index: 12, kind: input, shape index: {}]
  %s13 = inlined_call_operand.vmem [shape: f32[4,1,32], index: 13, kind: input, shape index: {}]
  %s14 = inlined_call_operand.vmem [shape: f32[4,32,64], index: 14, kind: input, shape index: {}]
  %s15 = inlined_call_operand.vmem [shape: f32[4,1,64], index: 15, kind: input, shape index: {}]
  %s16 = inlined_call_operand.vmem [shape: f32[4,64,32], index: 16, kind: input, shape index: {}]
  %s17 = inlined_call_operand.vmem [shape: f32[4,1,32], index: 17, kind: input, shape index: {}]
  %s18 = inlined_call_operand.vmem [shape: f32[1,32], index: 18, kind: input, shape index: {}]
  %s19 = inlined_call_operand.vmem [shape: f32[1,32], index: 19, kind: input, shape index: {}]
  %s20 = inlined_call_operand.vmem [shape: f32[32,128], index: 20, kind: input, shape index: {}]
  %s21 = inlined_call_operand.vmem [shape: f32[1,128], index: 21, kind: input, shape index: {}]
  %s22 = inlined_call_operand.hbm [shape: f32[2,8,128], index: 22, kind: output, shape index: {0}]
  %s23 = inlined_call_operand.hbm [shape: f32[2,4,2,8,8], index: 23, kind: output, shape index: {1}]
  %24 = xla_tuple %s22, %s23
  %s25 = sld [smem:[#allocation0]]
  $region137: #{tpu_custom_call.1} parent=0
    _
  %s27 = ssub.s32 1, %s25
  %s28 = scalar_select 0, %s27, %s25
  $region1: #{tpu_custom_call.1} parent=0
    #allocation3 [shape = 'u8[8192]{0}', space=vmem, size = 0x2000, scoped, tag = 'output window, operand 0']
    #allocation4 [shape = 's32[2]{0}', space=sflag, size = 0x8, scoped, tag = 'scoped memory for tpu_custom_call.1']
    #allocation5 [shape = 'u8[16384]{0}', space=vmem, size = 0x4000, scoped, tag = 'output window, operand 1']
    #allocation6 [shape = 's32[2]{0}', space=sflag, size = 0x8, scoped, tag = 'scoped memory for tpu_custom_call.1']
    %29 = vsyncpa [#allocation4], 0
    %s30 = scalar_lea.sflag [#allocation4], 1
    %31 = vsyncpa %s30, 0
    %32 = vsyncpa [#allocation6], 0
    %s33 = scalar_lea.sflag [#allocation6], 1
    %34 = vsyncpa %s33, 0
    loop: start=0, step=1, limit=10
    $region2: #{tpu_custom_call.1} parent=1 // loop_pre_header
      _
    $region3: #{tpu_custom_call.1} parent=1 // loop_header
      %s36 = sphi 0, %s40
      %p37 = scmp.ge.s32.totalorder %s36, 10
      %s43 = sphi 0, %s55
      %s44 = sphi 0, %s51
      %s45 = sphi 0, %s43
      %s46 = sphi 0, %s44
      %s47 = sphi 0, %s45
      %s48 = sphi 0, %s46
      %s58 = sphi 0, %s60
      %s61 = sphi 0, %s58
      %s62 = sphi 0, %s61
      %s78 = sphi 0, %s62
      %s82 = sphi 0, %s82
      %s84 = sphi 0, %s82
      %s85 = sphi 0, %s84
      %s99 = sphi 0, %s85
      %s105 = sphi 0, %s107
      %s108 = sphi 0, %s105
      %s109 = sphi 0, %s108
      %s125 = sphi 0, %s109
      %s131 = sphi 0, %s133
      %s134 = sphi 0, %s131
      %s135 = sphi 0, %s134
      %s151 = sphi 0, %s135
      %s157 = sphi 0, %s159
      %s160 = sphi 0, %s157
      %s161 = sphi 0, %s160
      %s177 = sphi 0, %s161
      %s183 = sphi 0, %s185
      %s186 = sphi 0, %s183
      %s187 = sphi 0, %s186
      %s203 = sphi 0, %s187
      %s209 = sphi 0, %s211
      %s212 = sphi 0, %s209
      %s213 = sphi 0, %s212
      %s229 = sphi 0, %s213
      %s235 = sphi 0, %s237
      %s238 = sphi 0, %s235
      %s239 = sphi 0, %s238
      %s255 = sphi 0, %s239
      %s261 = sphi 0, %s263
      %s264 = sphi 0, %s261
      %s265 = sphi 0, %s264
      %s281 = sphi 0, %s265
      %s287 = sphi 0, %s289
      %s290 = sphi 0, %s287
      %s291 = sphi 0, %s290
      %s307 = sphi 0, %s291
      %s313 = sphi 0, %s315
      %s316 = sphi 0, %s313
      %s317 = sphi 0, %s316
      %s333 = sphi 0, %s317
      %s339 = sphi 0, %s341
      %s342 = sphi 0, %s339
      %s343 = sphi 0, %s342
      %s359 = sphi 0, %s343
      %s365 = sphi 0, %s367
      %s368 = sphi 0, %s365
      %s369 = sphi 0, %s368
      %s385 = sphi 0, %s369
      %s391 = sphi 0, %s393
      %s394 = sphi 0, %s391
      %s395 = sphi 0, %s394
      %s411 = sphi 0, %s395
      %s417 = sphi 0, %s419
      %s420 = sphi 0, %s417
      %s421 = sphi 0, %s420
      %s437 = sphi 0, %s421
      %s443 = sphi 0, %s445
      %s446 = sphi 0, %s443
      %s447 = sphi 0, %s446
      %s463 = sphi 0, %s447
      %s469 = sphi 0, %s471
      %s472 = sphi 0, %s469
      %s473 = sphi 0, %s472
      %s489 = sphi 0, %s473
      %s495 = sphi 0, %s497
      %s498 = sphi 0, %s495
      %s499 = sphi 0, %s498
      %s515 = sphi 0, %s499
      %s519 = sphi 0, %s519
      %s521 = sphi 0, %s519
      %s522 = sphi 0, %s521
      %s536 = sphi 0, %s522
      %s540 = sphi 0, %s540
      %s542 = sphi 0, %s540
      %s543 = sphi 0, %s542
      %s557 = sphi 0, %s543
      %s561 = sphi 0, %s561
      %s563 = sphi 0, %s561
      %s564 = sphi 0, %s563
      %s578 = sphi 0, %s564
      %s582 = sphi 0, %s582
      %s584 = sphi 0, %s582
      %s585 = sphi 0, %s584
      %s599 = sphi 0, %s585
      %s605 = sphi 0, %s607
      %s608 = sphi 0, %s605
      %s609 = sphi 0, %s608
      %s625 = sphi 0, %s609
      %s633 = sphi 0, %s635
      %s636 = sphi 0, %s633
      %s637 = sphi 0, %s636
      %s653 = sphi 0, %s637
    $region4: #{tpu_custom_call.1} parent=1 // loop_header_branch
      %39 = sbr.rel (%p37) target = $region8
    $region5: #{tpu_custom_call.1} parent=1 // loop_body
      %s41 = ssub.s32 %s36, 1
      %s42 = ssub.s32 %s36, 2
      %s49 = sadd.s32 1, %s44
      %p50 = scmp.ge.s32.totalorder %s49, 4
      %s51 = scalar_select %p50, 0, %s49
      %s52 = sadd.s32 1, %s43
      %s53 = scalar_select %p50, %s52, %s43
      %p54 = scmp.ge.s32.totalorder %s53, 2
      %s55 = scalar_select %p54, 0, %s53
      %s56 = ssub.s32 %s43, %s55
      %p57 = scmp.eq.s32.totalorder %s56, 0
      %s59 = sadd.s32 %s58, 1
      %s60 = scalar_select %p57, %s58, %s59
      %p63 = pneg %p57
      %p64 = scmp.eq.s32.totalorder %s36, 7
      %p65 = por %p63, %p64
      %p66 = scmp.ne.s32.totalorder %s58, %s61
      %p67 = scmp.eq.s32.totalorder %s36, 0
      %p68 = por %p66, %p67
      %p69 = scmp.ne.s32.totalorder %s58, %s61
      %p70 = scmp.eq.s32.totalorder %s41, 7
      %p71 = por %p69, %p70
      %p72 = scmp.ne.s32.totalorder %s61, %s62
      %p73 = scmp.eq.s32.totalorder %s41, 0
      %p74 = por %p72, %p73
      %p75 = scmp.ne.s32.totalorder %s61, %s62
      %p76 = scmp.eq.s32.totalorder %s42, 7
      %p77 = por %p75, %p76
      %p79 = scmp.ne.s32.totalorder %s62, %s78
      %p80 = scmp.eq.s32.totalorder %s42, 0
      %p81 = por %p79, %p80
      %s83 = sadd.s32 %s82, 1
      %p86 = scmp.eq.s32.totalorder %s36, 7
      %p87 = scmp.ne.s32.totalorder %s82, %s84
      %p88 = scmp.eq.s32.totalorder %s36, 0
      %p89 = por %p87, %p88
      %p90 = scmp.ne.s32.totalorder %s82, %s84
      %p91 = scmp.eq.s32.totalorder %s41, 7
      %p92 = por %p90, %p91
      %p93 = scmp.ne.s32.totalorder %s84, %s85
      %p94 = scmp.eq.s32.totalorder %s41, 0
      %p95 = por %p93, %p94
      %p96 = scmp.ne.s32.totalorder %s84, %s85
      %p97 = scmp.eq.s32.totalorder %s42, 7
      %p98 = por %p96, %p97
      %p100 = scmp.ne.s32.totalorder %s85, %s99
      %p101 = scmp.eq.s32.totalorder %s42, 0
      %p102 = por %p100, %p101
      %s103 = ssub.s32 %s44, %s51
      %p104 = scmp.eq.s32.totalorder %s103, 0
      %s106 = sadd.s32 %s105, 1
      %s107 = scalar_select %p104, %s105, %s106
      %p110 = pneg %p104
      %p111 = scmp.eq.s32.totalorder %s36, 7
      %p112 = por %p110, %p111
      %p113 = scmp.ne.s32.totalorder %s105, %s108
      %p114 = scmp.eq.s32.totalorder %s36, 0
      %p115 = por %p113, %p114
      %p116 = scmp.ne.s32.totalorder %s105, %s108
      %p117 = scmp.eq.s32.totalorder %s41, 7
      %p118 = por %p116, %p117
      %p119 = scmp.ne.s32.totalorder %s108, %s109
      %p120 = scmp.eq.s32.totalorder %s41, 0
      %p121 = por %p119, %p120
      %p122 = scmp.ne.s32.totalorder %s108, %s109
      %p123 = scmp.eq.s32.totalorder %s42, 7
      %p124 = por %p122, %p123
      %p126 = scmp.ne.s32.totalorder %s109, %s125
      %p127 = scmp.eq.s32.totalorder %s42, 0
      %p128 = por %p126, %p127
      %s129 = ssub.s32 %s44, %s51
      %p130 = scmp.eq.s32.totalorder %s129, 0
      %s132 = sadd.s32 %s131, 1
      %s133 = scalar_select %p130, %s131, %s132
      %p136 = pneg %p130
      %p137 = scmp.eq.s32.totalorder %s36, 7
      %p138 = por %p136, %p137
      %p139 = scmp.ne.s32.totalorder %s131, %s134
      %p140 = scmp.eq.s32.totalorder %s36, 0
      %p141 = por %p139, %p140
      %p142 = scmp.ne.s32.totalorder %s131, %s134
      %p143 = scmp.eq.s32.totalorder %s41, 7
      %p144 = por %p142, %p143
      %p145 = scmp.ne.s32.totalorder %s134, %s135
      %p146 = scmp.eq.s32.totalorder %s41, 0
      %p147 = por %p145, %p146
      %p148 = scmp.ne.s32.totalorder %s134, %s135
      %p149 = scmp.eq.s32.totalorder %s42, 7
      %p150 = por %p148, %p149
      %p152 = scmp.ne.s32.totalorder %s135, %s151
      %p153 = scmp.eq.s32.totalorder %s42, 0
      %p154 = por %p152, %p153
      %s155 = ssub.s32 %s44, %s51
      %p156 = scmp.eq.s32.totalorder %s155, 0
      %s158 = sadd.s32 %s157, 1
      %s159 = scalar_select %p156, %s157, %s158
      %p162 = pneg %p156
      %p163 = scmp.eq.s32.totalorder %s36, 7
      %p164 = por %p162, %p163
      %p165 = scmp.ne.s32.totalorder %s157, %s160
      %p166 = scmp.eq.s32.totalorder %s36, 0
      %p167 = por %p165, %p166
      %p168 = scmp.ne.s32.totalorder %s157, %s160
      %p169 = scmp.eq.s32.totalorder %s41, 7
      %p170 = por %p168, %p169
      %p171 = scmp.ne.s32.totalorder %s160, %s161
      %p172 = scmp.eq.s32.totalorder %s41, 0
      %p173 = por %p171, %p172
      %p174 = scmp.ne.s32.totalorder %s160, %s161
      %p175 = scmp.eq.s32.totalorder %s42, 7
      %p176 = por %p174, %p175
      %p178 = scmp.ne.s32.totalorder %s161, %s177
      %p179 = scmp.eq.s32.totalorder %s42, 0
      %p180 = por %p178, %p179
      %s181 = ssub.s32 %s44, %s51
      %p182 = scmp.eq.s32.totalorder %s181, 0
      %s184 = sadd.s32 %s183, 1
      %s185 = scalar_select %p182, %s183, %s184
      %p188 = pneg %p182
      %p189 = scmp.eq.s32.totalorder %s36, 7
      %p190 = por %p188, %p189
      %p191 = scmp.ne.s32.totalorder %s183, %s186
      %p192 = scmp.eq.s32.totalorder %s36, 0
      %p193 = por %p191, %p192
      %p194 = scmp.ne.s32.totalorder %s183, %s186
      %p195 = scmp.eq.s32.totalorder %s41, 7
      %p196 = por %p194, %p195
      %p197 = scmp.ne.s32.totalorder %s186, %s187
      %p198 = scmp.eq.s32.totalorder %s41, 0
      %p199 = por %p197, %p198
      %p200 = scmp.ne.s32.totalorder %s186, %s187
      %p201 = scmp.eq.s32.totalorder %s42, 7
      %p202 = por %p200, %p201
      %p204 = scmp.ne.s32.totalorder %s187, %s203
      %p205 = scmp.eq.s32.totalorder %s42, 0
      %p206 = por %p204, %p205
      %s207 = ssub.s32 %s44, %s51
      %p208 = scmp.eq.s32.totalorder %s207, 0
      %s210 = sadd.s32 %s209, 1
      %s211 = scalar_select %p208, %s209, %s210
      %p214 = pneg %p208
      %p215 = scmp.eq.s32.totalorder %s36, 7
      %p216 = por %p214, %p215
      %p217 = scmp.ne.s32.totalorder %s209, %s212
      %p218 = scmp.eq.s32.totalorder %s36, 0
      %p219 = por %p217, %p218
      %p220 = scmp.ne.s32.totalorder %s209, %s212
      %p221 = scmp.eq.s32.totalorder %s41, 7
      %p222 = por %p220, %p221
      %p223 = scmp.ne.s32.totalorder %s212, %s213
      %p224 = scmp.eq.s32.totalorder %s41, 0
      %p225 = por %p223, %p224
      %p226 = scmp.ne.s32.totalorder %s212, %s213
      %p227 = scmp.eq.s32.totalorder %s42, 7
      %p228 = por %p226, %p227
      %p230 = scmp.ne.s32.totalorder %s213, %s229
      %p231 = scmp.eq.s32.totalorder %s42, 0
      %p232 = por %p230, %p231
      %s233 = ssub.s32 %s44, %s51
      %p234 = scmp.eq.s32.totalorder %s233, 0
      %s236 = sadd.s32 %s235, 1
      %s237 = scalar_select %p234, %s235, %s236
      %p240 = pneg %p234
      %p241 = scmp.eq.s32.totalorder %s36, 7
      %p242 = por %p240, %p241
      %p243 = scmp.ne.s32.totalorder %s235, %s238
      %p244 = scmp.eq.s32.totalorder %s36, 0
      %p245 = por %p243, %p244
      %p246 = scmp.ne.s32.totalorder %s235, %s238
      %p247 = scmp.eq.s32.totalorder %s41, 7
      %p248 = por %p246, %p247
      %p249 = scmp.ne.s32.totalorder %s238, %s239
      %p250 = scmp.eq.s32.totalorder %s41, 0
      %p251 = por %p249, %p250
      %p252 = scmp.ne.s32.totalorder %s238, %s239
      %p253 = scmp.eq.s32.totalorder %s42, 7
      %p254 = por %p252, %p253
      %p256 = scmp.ne.s32.totalorder %s239, %s255
      %p257 = scmp.eq.s32.totalorder %s42, 0
      %p258 = por %p256, %p257
      %s259 = ssub.s32 %s44, %s51
      %p260 = scmp.eq.s32.totalorder %s259, 0
      %s262 = sadd.s32 %s261, 1
      %s263 = scalar_select %p260, %s261, %s262
      %p266 = pneg %p260
      %p267 = scmp.eq.s32.totalorder %s36, 7
      %p268 = por %p266, %p267
      %p269 = scmp.ne.s32.totalorder %s261, %s264
      %p270 = scmp.eq.s32.totalorder %s36, 0
      %p271 = por %p269, %p270
      %p272 = scmp.ne.s32.totalorder %s261, %s264
      %p273 = scmp.eq.s32.totalorder %s41, 7
      %p274 = por %p272, %p273
      %p275 = scmp.ne.s32.totalorder %s264, %s265
      %p276 = scmp.eq.s32.totalorder %s41, 0
      %p277 = por %p275, %p276
      %p278 = scmp.ne.s32.totalorder %s264, %s265
      %p279 = scmp.eq.s32.totalorder %s42, 7
      %p280 = por %p278, %p279
      %p282 = scmp.ne.s32.totalorder %s265, %s281
      %p283 = scmp.eq.s32.totalorder %s42, 0
      %p284 = por %p282, %p283
      %s285 = ssub.s32 %s44, %s51
      %p286 = scmp.eq.s32.totalorder %s285, 0
      %s288 = sadd.s32 %s287, 1
      %s289 = scalar_select %p286, %s287, %s288
      %p292 = pneg %p286
      %p293 = scmp.eq.s32.totalorder %s36, 7
      %p294 = por %p292, %p293
      %p295 = scmp.ne.s32.totalorder %s287, %s290
      %p296 = scmp.eq.s32.totalorder %s36, 0
      %p297 = por %p295, %p296
      %p298 = scmp.ne.s32.totalorder %s287, %s290
      %p299 = scmp.eq.s32.totalorder %s41, 7
      %p300 = por %p298, %p299
      %p301 = scmp.ne.s32.totalorder %s290, %s291
      %p302 = scmp.eq.s32.totalorder %s41, 0
      %p303 = por %p301, %p302
      %p304 = scmp.ne.s32.totalorder %s290, %s291
      %p305 = scmp.eq.s32.totalorder %s42, 7
      %p306 = por %p304, %p305
      %p308 = scmp.ne.s32.totalorder %s291, %s307
      %p309 = scmp.eq.s32.totalorder %s42, 0
      %p310 = por %p308, %p309
      %s311 = ssub.s32 %s44, %s51
      %p312 = scmp.eq.s32.totalorder %s311, 0
      %s314 = sadd.s32 %s313, 1
      %s315 = scalar_select %p312, %s313, %s314
      %p318 = pneg %p312
      %p319 = scmp.eq.s32.totalorder %s36, 7
      %p320 = por %p318, %p319
      %p321 = scmp.ne.s32.totalorder %s313, %s316
      %p322 = scmp.eq.s32.totalorder %s36, 0
      %p323 = por %p321, %p322
      %p324 = scmp.ne.s32.totalorder %s313, %s316
      %p325 = scmp.eq.s32.totalorder %s41, 7
      %p326 = por %p324, %p325
      %p327 = scmp.ne.s32.totalorder %s316, %s317
      %p328 = scmp.eq.s32.totalorder %s41, 0
      %p329 = por %p327, %p328
      %p330 = scmp.ne.s32.totalorder %s316, %s317
      %p331 = scmp.eq.s32.totalorder %s42, 7
      %p332 = por %p330, %p331
      %p334 = scmp.ne.s32.totalorder %s317, %s333
      %p335 = scmp.eq.s32.totalorder %s42, 0
      %p336 = por %p334, %p335
      %s337 = ssub.s32 %s44, %s51
      %p338 = scmp.eq.s32.totalorder %s337, 0
      %s340 = sadd.s32 %s339, 1
      %s341 = scalar_select %p338, %s339, %s340
      %p344 = pneg %p338
      %p345 = scmp.eq.s32.totalorder %s36, 7
      %p346 = por %p344, %p345
      %p347 = scmp.ne.s32.totalorder %s339, %s342
      %p348 = scmp.eq.s32.totalorder %s36, 0
      %p349 = por %p347, %p348
      %p350 = scmp.ne.s32.totalorder %s339, %s342
      %p351 = scmp.eq.s32.totalorder %s41, 7
      %p352 = por %p350, %p351
      %p353 = scmp.ne.s32.totalorder %s342, %s343
      %p354 = scmp.eq.s32.totalorder %s41, 0
      %p355 = por %p353, %p354
      %p356 = scmp.ne.s32.totalorder %s342, %s343
      %p357 = scmp.eq.s32.totalorder %s42, 7
      %p358 = por %p356, %p357
      %p360 = scmp.ne.s32.totalorder %s343, %s359
      %p361 = scmp.eq.s32.totalorder %s42, 0
      %p362 = por %p360, %p361
      %s363 = ssub.s32 %s44, %s51
      %p364 = scmp.eq.s32.totalorder %s363, 0
      %s366 = sadd.s32 %s365, 1
      %s367 = scalar_select %p364, %s365, %s366
      %p370 = pneg %p364
      %p371 = scmp.eq.s32.totalorder %s36, 7
      %p372 = por %p370, %p371
      %p373 = scmp.ne.s32.totalorder %s365, %s368
      %p374 = scmp.eq.s32.totalorder %s36, 0
      %p375 = por %p373, %p374
      %p376 = scmp.ne.s32.totalorder %s365, %s368
      %p377 = scmp.eq.s32.totalorder %s41, 7
      %p378 = por %p376, %p377
      %p379 = scmp.ne.s32.totalorder %s368, %s369
      %p380 = scmp.eq.s32.totalorder %s41, 0
      %p381 = por %p379, %p380
      %p382 = scmp.ne.s32.totalorder %s368, %s369
      %p383 = scmp.eq.s32.totalorder %s42, 7
      %p384 = por %p382, %p383
      %p386 = scmp.ne.s32.totalorder %s369, %s385
      %p387 = scmp.eq.s32.totalorder %s42, 0
      %p388 = por %p386, %p387
      %s389 = ssub.s32 %s44, %s51
      %p390 = scmp.eq.s32.totalorder %s389, 0
      %s392 = sadd.s32 %s391, 1
      %s393 = scalar_select %p390, %s391, %s392
      %p396 = pneg %p390
      %p397 = scmp.eq.s32.totalorder %s36, 7
      %p398 = por %p396, %p397
      %p399 = scmp.ne.s32.totalorder %s391, %s394
      %p400 = scmp.eq.s32.totalorder %s36, 0
      %p401 = por %p399, %p400
      %p402 = scmp.ne.s32.totalorder %s391, %s394
      %p403 = scmp.eq.s32.totalorder %s41, 7
      %p404 = por %p402, %p403
      %p405 = scmp.ne.s32.totalorder %s394, %s395
      %p406 = scmp.eq.s32.totalorder %s41, 0
      %p407 = por %p405, %p406
      %p408 = scmp.ne.s32.totalorder %s394, %s395
      %p409 = scmp.eq.s32.totalorder %s42, 7
      %p410 = por %p408, %p409
      %p412 = scmp.ne.s32.totalorder %s395, %s411
      %p413 = scmp.eq.s32.totalorder %s42, 0
      %p414 = por %p412, %p413
      %s415 = ssub.s32 %s44, %s51
      %p416 = scmp.eq.s32.totalorder %s415, 0
      %s418 = sadd.s32 %s417, 1
      %s419 = scalar_select %p416, %s417, %s418
      %p422 = pneg %p416
      %p423 = scmp.eq.s32.totalorder %s36, 7
      %p424 = por %p422, %p423
      %p425 = scmp.ne.s32.totalorder %s417, %s420
      %p426 = scmp.eq.s32.totalorder %s36, 0
      %p427 = por %p425, %p426
      %p428 = scmp.ne.s32.totalorder %s417, %s420
      %p429 = scmp.eq.s32.totalorder %s41, 7
      %p430 = por %p428, %p429
      %p431 = scmp.ne.s32.totalorder %s420, %s421
      %p432 = scmp.eq.s32.totalorder %s41, 0
      %p433 = por %p431, %p432
      %p434 = scmp.ne.s32.totalorder %s420, %s421
      %p435 = scmp.eq.s32.totalorder %s42, 7
      %p436 = por %p434, %p435
      %p438 = scmp.ne.s32.totalorder %s421, %s437
      %p439 = scmp.eq.s32.totalorder %s42, 0
      %p440 = por %p438, %p439
      %s441 = ssub.s32 %s44, %s51
      %p442 = scmp.eq.s32.totalorder %s441, 0
      %s444 = sadd.s32 %s443, 1
      %s445 = scalar_select %p442, %s443, %s444
      %p448 = pneg %p442
      %p449 = scmp.eq.s32.totalorder %s36, 7
      %p450 = por %p448, %p449
      %p451 = scmp.ne.s32.totalorder %s443, %s446
      %p452 = scmp.eq.s32.totalorder %s36, 0
      %p453 = por %p451, %p452
      %p454 = scmp.ne.s32.totalorder %s443, %s446
      %p455 = scmp.eq.s32.totalorder %s41, 7
      %p456 = por %p454, %p455
      %p457 = scmp.ne.s32.totalorder %s446, %s447
      %p458 = scmp.eq.s32.totalorder %s41, 0
      %p459 = por %p457, %p458
      %p460 = scmp.ne.s32.totalorder %s446, %s447
      %p461 = scmp.eq.s32.totalorder %s42, 7
      %p462 = por %p460, %p461
      %p464 = scmp.ne.s32.totalorder %s447, %s463
      %p465 = scmp.eq.s32.totalorder %s42, 0
      %p466 = por %p464, %p465
      %s467 = ssub.s32 %s44, %s51
      %p468 = scmp.eq.s32.totalorder %s467, 0
      %s470 = sadd.s32 %s469, 1
      %s471 = scalar_select %p468, %s469, %s470
      %p474 = pneg %p468
      %p475 = scmp.eq.s32.totalorder %s36, 7
      %p476 = por %p474, %p475
      %p477 = scmp.ne.s32.totalorder %s469, %s472
      %p478 = scmp.eq.s32.totalorder %s36, 0
      %p479 = por %p477, %p478
      %p480 = scmp.ne.s32.totalorder %s469, %s472
      %p481 = scmp.eq.s32.totalorder %s41, 7
      %p482 = por %p480, %p481
      %p483 = scmp.ne.s32.totalorder %s472, %s473
      %p484 = scmp.eq.s32.totalorder %s41, 0
      %p485 = por %p483, %p484
      %p486 = scmp.ne.s32.totalorder %s472, %s473
      %p487 = scmp.eq.s32.totalorder %s42, 7
      %p488 = por %p486, %p487
      %p490 = scmp.ne.s32.totalorder %s473, %s489
      %p491 = scmp.eq.s32.totalorder %s42, 0
      %p492 = por %p490, %p491
      %s493 = ssub.s32 %s44, %s51
      %p494 = scmp.eq.s32.totalorder %s493, 0
      %s496 = sadd.s32 %s495, 1
      %s497 = scalar_select %p494, %s495, %s496
      %p500 = pneg %p494
      %p501 = scmp.eq.s32.totalorder %s36, 7
      %p502 = por %p500, %p501
      %p503 = scmp.ne.s32.totalorder %s495, %s498
      %p504 = scmp.eq.s32.totalorder %s36, 0
      %p505 = por %p503, %p504
      %p506 = scmp.ne.s32.totalorder %s495, %s498
      %p507 = scmp.eq.s32.totalorder %s41, 7
      %p508 = por %p506, %p507
      %p509 = scmp.ne.s32.totalorder %s498, %s499
      %p510 = scmp.eq.s32.totalorder %s41, 0
      %p511 = por %p509, %p510
      %p512 = scmp.ne.s32.totalorder %s498, %s499
      %p513 = scmp.eq.s32.totalorder %s42, 7
      %p514 = por %p512, %p513
      %p516 = scmp.ne.s32.totalorder %s499, %s515
      %p517 = scmp.eq.s32.totalorder %s42, 0
      %p518 = por %p516, %p517
      %s520 = sadd.s32 %s519, 1
      %p523 = scmp.eq.s32.totalorder %s36, 7
      %p524 = scmp.ne.s32.totalorder %s519, %s521
      %p525 = scmp.eq.s32.totalorder %s36, 0
      %p526 = por %p524, %p525
      %p527 = scmp.ne.s32.totalorder %s519, %s521
      %p528 = scmp.eq.s32.totalorder %s41, 7
      %p529 = por %p527, %p528
      %p530 = scmp.ne.s32.totalorder %s521, %s522
      %p531 = scmp.eq.s32.totalorder %s41, 0
      %p532 = por %p530, %p531
      %p533 = scmp.ne.s32.totalorder %s521, %s522
      %p534 = scmp.eq.s32.totalorder %s42, 7
      %p535 = por %p533, %p534
      %p537 = scmp.ne.s32.totalorder %s522, %s536
      %p538 = scmp.eq.s32.totalorder %s42, 0
      %p539 = por %p537, %p538
      %s541 = sadd.s32 %s540, 1
      %p544 = scmp.eq.s32.totalorder %s36, 7
      %p545 = scmp.ne.s32.totalorder %s540, %s542
      %p546 = scmp.eq.s32.totalorder %s36, 0
      %p547 = por %p545, %p546
      %p548 = scmp.ne.s32.totalorder %s540, %s542
      %p549 = scmp.eq.s32.totalorder %s41, 7
      %p550 = por %p548, %p549
      %p551 = scmp.ne.s32.totalorder %s542, %s543
      %p552 = scmp.eq.s32.totalorder %s41, 0
      %p553 = por %p551, %p552
      %p554 = scmp.ne.s32.totalorder %s542, %s543
      %p555 = scmp.eq.s32.totalorder %s42, 7
      %p556 = por %p554, %p555
      %p558 = scmp.ne.s32.totalorder %s543, %s557
      %p559 = scmp.eq.s32.totalorder %s42, 0
      %p560 = por %p558, %p559
      %s562 = sadd.s32 %s561, 1
      %p565 = scmp.eq.s32.totalorder %s36, 7
      %p566 = scmp.ne.s32.totalorder %s561, %s563
      %p567 = scmp.eq.s32.totalorder %s36, 0
      %p568 = por %p566, %p567
      %p569 = scmp.ne.s32.totalorder %s561, %s563
      %p570 = scmp.eq.s32.totalorder %s41, 7
      %p571 = por %p569, %p570
      %p572 = scmp.ne.s32.totalorder %s563, %s564
      %p573 = scmp.eq.s32.totalorder %s41, 0
      %p574 = por %p572, %p573
      %p575 = scmp.ne.s32.totalorder %s563, %s564
      %p576 = scmp.eq.s32.totalorder %s42, 7
      %p577 = por %p575, %p576
      %p579 = scmp.ne.s32.totalorder %s564, %s578
      %p580 = scmp.eq.s32.totalorder %s42, 0
      %p581 = por %p579, %p580
      %s583 = sadd.s32 %s582, 1
      %p586 = scmp.eq.s32.totalorder %s36, 7
      %p587 = scmp.ne.s32.totalorder %s582, %s584
      %p588 = scmp.eq.s32.totalorder %s36, 0
      %p589 = por %p587, %p588
      %p590 = scmp.ne.s32.totalorder %s582, %s584
      %p591 = scmp.eq.s32.totalorder %s41, 7
      %p592 = por %p590, %p591
      %p593 = scmp.ne.s32.totalorder %s584, %s585
      %p594 = scmp.eq.s32.totalorder %s41, 0
      %p595 = por %p593, %p594
      %p596 = scmp.ne.s32.totalorder %s584, %s585
      %p597 = scmp.eq.s32.totalorder %s42, 7
      %p598 = por %p596, %p597
      %p600 = scmp.ne.s32.totalorder %s585, %s599
      %p601 = scmp.eq.s32.totalorder %s42, 0
      %p602 = por %p600, %p601
      %s603 = ssub.s32 %s43, %s55
      %p604 = scmp.eq.s32.totalorder %s603, 0
      %s606 = sadd.s32 %s605, 1
      %s607 = scalar_select %p604, %s605, %s606
      %p610 = pneg %p604
      %p611 = scmp.eq.s32.totalorder %s36, 7
      %p612 = por %p610, %p611
      %p613 = scmp.ne.s32.totalorder %s605, %s608
      %p614 = scmp.eq.s32.totalorder %s36, 0
      %p615 = por %p613, %p614
      %p616 = scmp.ne.s32.totalorder %s605, %s608
      %p617 = scmp.eq.s32.totalorder %s41, 7
      %p618 = por %p616, %p617
      %p619 = scmp.ne.s32.totalorder %s608, %s609
      %p620 = scmp.eq.s32.totalorder %s41, 0
      %p621 = por %p619, %p620
      %p622 = scmp.ne.s32.totalorder %s608, %s609
      %p623 = scmp.eq.s32.totalorder %s42, 7
      %p624 = por %p622, %p623
      %p626 = scmp.ne.s32.totalorder %s609, %s625
      %p627 = scmp.eq.s32.totalorder %s42, 0
      %p628 = por %p626, %p627
      %s629 = ssub.s32 %s43, %s55
      %s630 = ssub.s32 %s44, %s51
      %s631 = sor.u32 %s629, %s630
      %p632 = scmp.eq.s32.totalorder %s631, 0
      %s634 = sadd.s32 %s633, 1
      %s635 = scalar_select %p632, %s633, %s634
      %p638 = pneg %p632
      %p639 = scmp.eq.s32.totalorder %s36, 7
      %p640 = por %p638, %p639
      %p641 = scmp.ne.s32.totalorder %s633, %s636
      %p642 = scmp.eq.s32.totalorder %s36, 0
      %p643 = por %p641, %p642
      %p644 = scmp.ne.s32.totalorder %s633, %s636
      %p645 = scmp.eq.s32.totalorder %s41, 7
      %p646 = por %p644, %p645
      %p647 = scmp.ne.s32.totalorder %s636, %s637
      %p648 = scmp.eq.s32.totalorder %s41, 0
      %p649 = por %p647, %p648
      %p650 = scmp.ne.s32.totalorder %s636, %s637
      %p651 = scmp.eq.s32.totalorder %s42, 7
      %p652 = por %p650, %p651
      %p654 = scmp.ne.s32.totalorder %s637, %s653
      %p655 = scmp.eq.s32.totalorder %s42, 0
      %p656 = por %p654, %p655
      %p657 = scmp.le.s32.totalorder 1, %s36
      %p658 = scmp.lt.s32.totalorder %s36, 9
      %p659 = pnand %p657, %p658
      %p660 = pneg %p659
      // Predicated region
      $region9: #{tpu_custom_call.1} parent=5 // pred_check
        _
      $region10: #{tpu_custom_call.1} parent=5 // pred_check_branch
        %662 = sbr.rel (%p659) target = $region12
      $region11: #{tpu_custom_call.1} parent=5 // pred_region
        %s663 = ssub.s32 %s36, 1
        // Predicated region
        $region13: #{tpu_custom_call.1} parent=11 // pred_check
          %p664 = pneg %p95
        $region14: #{tpu_custom_call.1} parent=11 // pred_check_branch
          %666 = sbr.rel (%p664) target = $region16
        $region15: #{tpu_custom_call.1} parent=11 // pred_region
          _
        $region16: #{tpu_custom_call.1} parent=11 // pred_fallthru
          _
        // Predicated region
        $region17: #{tpu_custom_call.1} parent=11 // pred_check
          %p667 = pneg %p532
        $region18: #{tpu_custom_call.1} parent=11 // pred_check_branch
          %669 = sbr.rel (%p667) target = $region20
        $region19: #{tpu_custom_call.1} parent=11 // pred_region
          _
        $region20: #{tpu_custom_call.1} parent=11 // pred_fallthru
          _
        // Predicated region
        $region21: #{tpu_custom_call.1} parent=11 // pred_check
          %p670 = pneg %p553
        $region22: #{tpu_custom_call.1} parent=11 // pred_check_branch
          %672 = sbr.rel (%p670) target = $region24
        $region23: #{tpu_custom_call.1} parent=11 // pred_region
          _
        $region24: #{tpu_custom_call.1} parent=11 // pred_fallthru
          _
        // Predicated region
        $region25: #{tpu_custom_call.1} parent=11 // pred_check
          %p673 = pneg %p574
        $region26: #{tpu_custom_call.1} parent=11 // pred_check_branch
          %675 = sbr.rel (%p673) target = $region28
        $region27: #{tpu_custom_call.1} parent=11 // pred_region
          _
        $region28: #{tpu_custom_call.1} parent=11 // pred_fallthru
          _
        // Predicated region
        $region29: #{tpu_custom_call.1} parent=11 // pred_check
          %p676 = pneg %p595
        $region30: #{tpu_custom_call.1} parent=11 // pred_check_branch
          %678 = sbr.rel (%p676) target = $region32
        $region31: #{tpu_custom_call.1} parent=11 // pred_region
          _
        $region32: #{tpu_custom_call.1} parent=11 // pred_fallthru
          _
      $region12: #{tpu_custom_call.1} parent=5 // pred_fallthru
        _
      %p679 = scmp.lt.s32.totalorder %s36, 8
      // Predicated region
      $region33: #{tpu_custom_call.1} parent=5 // pred_check
        %p680 = pneg %p679
      $region34: #{tpu_custom_call.1} parent=5 // pred_check_branch
        %682 = sbr.rel (%p680) target = $region36
      $region35: #{tpu_custom_call.1} parent=5 // pred_region
        // Predicated region
        $region37: #{tpu_custom_call.1} parent=35 // pred_check
          %p683 = pneg %p68
        $region38: #{tpu_custom_call.1} parent=35 // pred_check_branch
          %685 = sbr.rel (%p683) target = $region40
        $region39: #{tpu_custom_call.1} parent=35 // pred_region
          %p686 = scmp.lt.s32.totalorder %s43, 1
          %s687 = scalar_select %p686, %s43, 1
          %s688 = smul.addr %s687, 8
          %s689 = scalar_lea.vmem %s0, %s688
        $region40: #{tpu_custom_call.1} parent=35 // pred_fallthru
          _
        // Predicated region
        $region41: #{tpu_custom_call.1} parent=35 // pred_check
          %p690 = pneg %p115
        $region42: #{tpu_custom_call.1} parent=35 // pred_check_branch
          %692 = sbr.rel (%p690) target = $region44
        $region43: #{tpu_custom_call.1} parent=35 // pred_region
          %p693 = scmp.lt.s32.totalorder %s44, 3
          %s694 = scalar_select %p693, %s44, 3
          %s695 = scalar_lea.vmem %s2, %s694
        $region44: #{tpu_custom_call.1} parent=35 // pred_fallthru
          _
        // Predicated region
        $region45: #{tpu_custom_call.1} parent=35 // pred_check
          %p696 = pneg %p141
        $region46: #{tpu_custom_call.1} parent=35 // pred_check_branch
          %698 = sbr.rel (%p696) target = $region48
        $region47: #{tpu_custom_call.1} parent=35 // pred_region
          %p699 = scmp.lt.s32.totalorder %s44, 3
          %s700 = scalar_select %p699, %s44, 3
          %s701 = scalar_lea.vmem %s3, %s700
        $region48: #{tpu_custom_call.1} parent=35 // pred_fallthru
          _
        // Predicated region
        $region49: #{tpu_custom_call.1} parent=35 // pred_check
          %p702 = pneg %p167
        $region50: #{tpu_custom_call.1} parent=35 // pred_check_branch
          %704 = sbr.rel (%p702) target = $region52
        $region51: #{tpu_custom_call.1} parent=35 // pred_region
          %p705 = scmp.lt.s32.totalorder %s44, 3
          %s706 = scalar_select %p705, %s44, 3
          %s707 = smul.addr %s706, 8
          %s708 = smul.addr %s707, 8
          %s709 = scalar_lea.vmem %s4, %s708
        $region52: #{tpu_custom_call.1} parent=35 // pred_fallthru
          _
        // Predicated region
        $region53: #{tpu_custom_call.1} parent=35 // pred_check
          %p710 = pneg %p193
        $region54: #{tpu_custom_call.1} parent=35 // pred_check_branch
          %712 = sbr.rel (%p710) target = $region56
        $region55: #{tpu_custom_call.1} parent=35 // pred_region
          %p713 = scmp.lt.s32.totalorder %s44, 3
          %s714 = scalar_select %p713, %s44, 3
          %s715 = smul.addr %s714, 2
          %s716 = scalar_lea.vmem %s5, %s715
        $region56: #{tpu_custom_call.1} parent=35 // pred_fallthru
          _
        // Predicated region
        $region57: #{tpu_custom_call.1} parent=35 // pred_check
          %p717 = pneg %p219
        $region58: #{tpu_custom_call.1} parent=35 // pred_check_branch
          %719 = sbr.rel (%p717) target = $region60
        $region59: #{tpu_custom_call.1} parent=35 // pred_region
          %p720 = scmp.lt.s32.totalorder %s44, 3
          %s721 = scalar_select %p720, %s44, 3
          %s722 = smul.addr %s721, 8
          %s723 = smul.addr %s722, 8
          %s724 = scalar_lea.vmem %s6, %s723
        $region60: #{tpu_custom_call.1} parent=35 // pred_fallthru
          _
        // Predicated region
        $region61: #{tpu_custom_call.1} parent=35 // pred_check
          %p725 = pneg %p245
        $region62: #{tpu_custom_call.1} parent=35 // pred_check_branch
          %727 = sbr.rel (%p725) target = $region64
        $region63: #{tpu_custom_call.1} parent=35 // pred_region
          %p728 = scmp.lt.s32.totalorder %s44, 3
          %s729 = scalar_select %p728, %s44, 3
          %s730 = smul.addr %s729, 2
          %s731 = scalar_lea.vmem %s7, %s730
        $region64: #{tpu_custom_call.1} parent=35 // pred_fallthru
          _
        // Predicated region
        $region65: #{tpu_custom_call.1} parent=35 // pred_check
          %p732 = pneg %p271
        $region66: #{tpu_custom_call.1} parent=35 // pred_check_branch
          %734 = sbr.rel (%p732) target = $region68
        $region67: #{tpu_custom_call.1} parent=35 // pred_region
          %p735 = scmp.lt.s32.totalorder %s44, 3
          %s736 = scalar_select %p735, %s44, 3
          %s737 = smul.addr %s736, 8
          %s738 = smul.addr %s737, 8
          %s739 = scalar_lea.vmem %s8, %s738
        $region68: #{tpu_custom_call.1} parent=35 // pred_fallthru
          _
        // Predicated region
        $region69: #{tpu_custom_call.1} parent=35 // pred_check
          %p740 = pneg %p297
        $region70: #{tpu_custom_call.1} parent=35 // pred_check_branch
          %742 = sbr.rel (%p740) target = $region72
        $region71: #{tpu_custom_call.1} parent=35 // pred_region
          %p743 = scmp.lt.s32.totalorder %s44, 3
          %s744 = scalar_select %p743, %s44, 3
          %s745 = smul.addr %s744, 2
          %s746 = scalar_lea.vmem %s9, %s745
        $region72: #{tpu_custom_call.1} parent=35 // pred_fallthru
          _
        // Predicated region
        $region73: #{tpu_custom_call.1} parent=35 // pred_check
          %p747 = pneg %p323
        $region74: #{tpu_custom_call.1} parent=35 // pred_check_branch
          %749 = sbr.rel (%p747) target = $region76
        $region75: #{tpu_custom_call.1} parent=35 // pred_region
          %p750 = scmp.lt.s32.totalorder %s44, 3
          %s751 = scalar_select %p750, %s44, 3
          %s752 = smul.addr %s751, 4
          %s753 = smul.addr %s752, 8
          %s754 = scalar_lea.vmem %s10, %s753
        $region76: #{tpu_custom_call.1} parent=35 // pred_fallthru
          _
        // Predicated region
        $region77: #{tpu_custom_call.1} parent=35 // pred_check
          %p755 = pneg %p349
        $region78: #{tpu_custom_call.1} parent=35 // pred_check_branch
          %757 = sbr.rel (%p755) target = $region80
        $region79: #{tpu_custom_call.1} parent=35 // pred_region
          %p758 = scmp.lt.s32.totalorder %s44, 3
          %s759 = scalar_select %p758, %s44, 3
          %s760 = scalar_lea.vmem %s11, %s759
        $region80: #{tpu_custom_call.1} parent=35 // pred_fallthru
          _
        // Predicated region
        $region81: #{tpu_custom_call.1} parent=35 // pred_check
          %p761 = pneg %p375
        $region82: #{tpu_custom_call.1} parent=35 // pred_check_branch
          %763 = sbr.rel (%p761) target = $region84
        $region83: #{tpu_custom_call.1} parent=35 // pred_region
          %p764 = scmp.lt.s32.totalorder %s44, 3
          %s765 = scalar_select %p764, %s44, 3
          %s766 = scalar_lea.vmem %s12, %s765
        $region84: #{tpu_custom_call.1} parent=35 // pred_fallthru
          _
        // Predicated region
        $region85: #{tpu_custom_call.1} parent=35 // pred_check
          %p767 = pneg %p401
        $region86: #{tpu_custom_call.1} parent=35 // pred_check_branch
          %769 = sbr.rel (%p767) target = $region88
        $region87: #{tpu_custom_call.1} parent=35 // pred_region
          %p770 = scmp.lt.s32.totalorder %s44, 3
          %s771 = scalar_select %p770, %s44, 3
          %s772 = scalar_lea.vmem %s13, %s771
        $region88: #{tpu_custom_call.1} parent=35 // pred_fallthru
          _
        // Predicated region
        $region89: #{tpu_custom_call.1} parent=35 // pred_check
          %p773 = pneg %p427
        $region90: #{tpu_custom_call.1} parent=35 // pred_check_branch
          %775 = sbr.rel (%p773) target = $region92
        $region91: #{tpu_custom_call.1} parent=35 // pred_region
          %p776 = scmp.lt.s32.totalorder %s44, 3
          %s777 = scalar_select %p776, %s44, 3
          %s778 = smul.addr %s777, 4
          %s779 = smul.addr %s778, 8
          %s780 = scalar_lea.vmem %s14, %s779
        $region92: #{tpu_custom_call.1} parent=35 // pred_fallthru
          _
        // Predicated region
        $region93: #{tpu_custom_call.1} parent=35 // pred_check
          %p781 = pneg %p453
        $region94: #{tpu_custom_call.1} parent=35 // pred_check_branch
          %783 = sbr.rel (%p781) target = $region96
        $region95: #{tpu_custom_call.1} parent=35 // pred_region
          %p784 = scmp.lt.s32.totalorder %s44, 3
          %s785 = scalar_select %p784, %s44, 3
          %s786 = scalar_lea.vmem %s15, %s785
        $region96: #{tpu_custom_call.1} parent=35 // pred_fallthru
          _
        // Predicated region
        $region97: #{tpu_custom_call.1} parent=35 // pred_check
          %p787 = pneg %p479
        $region98: #{tpu_custom_call.1} parent=35 // pred_check_branch
          %789 = sbr.rel (%p787) target = $region100
        $region99: #{tpu_custom_call.1} parent=35 // pred_region
          %p790 = scmp.lt.s32.totalorder %s44, 3
          %s791 = scalar_select %p790, %s44, 3
          %s792 = smul.addr %s791, 8
          %s793 = smul.addr %s792, 8
          %s794 = scalar_lea.vmem %s16, %s793
        $region100: #{tpu_custom_call.1} parent=35 // pred_fallthru
          _
        // Predicated region
        $region101: #{tpu_custom_call.1} parent=35 // pred_check
          %p795 = pneg %p505
        $region102: #{tpu_custom_call.1} parent=35 // pred_check_branch
          %797 = sbr.rel (%p795) target = $region104
        $region103: #{tpu_custom_call.1} parent=35 // pred_region
          %p798 = scmp.lt.s32.totalorder %s44, 3
          %s799 = scalar_select %p798, %s44, 3
          %s800 = scalar_lea.vmem %s17, %s799
        $region104: #{tpu_custom_call.1} parent=35 // pred_fallthru
          _
      $region36: #{tpu_custom_call.1} parent=5 // pred_fallthru
        _
      %p801 = scmp.le.s32.totalorder 1, %s36
      %p802 = scmp.lt.s32.totalorder %s36, 9
      %p803 = pnand %p801, %p802
      %p804 = pneg %p803
      // Predicated region
      $region105: #{tpu_custom_call.1} parent=5 // pred_check
        _
      $region106: #{tpu_custom_call.1} parent=5 // pred_check_branch
        %806 = sbr.rel (%p803) target = $region108
      $region107: #{tpu_custom_call.1} parent=5 // pred_region
        %s807 = ssub.s32 %s36, 1
        %p808 = scmp.lt.s32.totalorder %s45, 1
        %s809 = scalar_select %p808, %s45, 1
        %s810 = smul.addr %s809, 8
        %s811 = scalar_lea.vmem %s0, %s810
        %p812 = pneg %p74
        %p813 = pneg %p71
        %p814 = pneg %p95
        %p815 = pneg %p92
        %p816 = scmp.lt.s32.totalorder %s46, 3
        %s817 = scalar_select %p816, %s46, 3
        %s818 = scalar_lea.vmem %s2, %s817
        %p819 = pneg %p121
        %p820 = pneg %p118
        %p821 = scmp.lt.s32.totalorder %s46, 3
        %s822 = scalar_select %p821, %s46, 3
        %s823 = scalar_lea.vmem %s3, %s822
        %p824 = pneg %p147
        %p825 = pneg %p144
        %p826 = scmp.lt.s32.totalorder %s46, 3
        %s827 = scalar_select %p826, %s46, 3
        %s828 = smul.addr %s827, 8
        %s829 = smul.addr %s828, 8
        %s830 = scalar_lea.vmem %s4, %s829
        %p831 = pneg %p173
        %p832 = pneg %p170
        %p833 = scmp.lt.s32.totalorder %s46, 3
        %s834 = scalar_select %p833, %s46, 3
        %s835 = smul.addr %s834, 2
        %s836 = scalar_lea.vmem %s5, %s835
        %p837 = pneg %p199
        %p838 = pneg %p196
        %p839 = scmp.lt.s32.totalorder %s46, 3
        %s840 = scalar_select %p839, %s46, 3
        %s841 = smul.addr %s840, 8
        %s842 = smul.addr %s841, 8
        %s843 = scalar_lea.vmem %s6, %s842
        %p844 = pneg %p225
        %p845 = pneg %p222
        %p846 = scmp.lt.s32.totalorder %s46, 3
        %s847 = scalar_select %p846, %s46, 3
        %s848 = smul.addr %s847, 2
        %s849 = scalar_lea.vmem %s7, %s848
        %p850 = pneg %p251
        %p851 = pneg %p248
        %p852 = scmp.lt.s32.totalorder %s46, 3
        %s853 = scalar_select %p852, %s46, 3
        %s854 = smul.addr %s853, 8
        %s855 = smul.addr %s854, 8
        %s856 = scalar_lea.vmem %s8, %s855
        %p857 = pneg %p277
        %p858 = pneg %p274
        %p859 = scmp.lt.s32.totalorder %s46, 3
        %s860 = scalar_select %p859, %s46, 3
        %s861 = smul.addr %s860, 2
        %s862 = scalar_lea.vmem %s9, %s861
        %p863 = pneg %p303
        %p864 = pneg %p300
        %p865 = scmp.lt.s32.totalorder %s46, 3
        %s866 = scalar_select %p865, %s46, 3
        %s867 = smul.addr %s866, 4
        %s868 = smul.addr %s867, 8
        %s869 = scalar_lea.vmem %s10, %s868
        %p870 = pneg %p329
        %p871 = pneg %p326
        %p872 = scmp.lt.s32.totalorder %s46, 3
        %s873 = scalar_select %p872, %s46, 3
        %s874 = scalar_lea.vmem %s11, %s873
        %p875 = pneg %p355
        %p876 = pneg %p352
        %p877 = scmp.lt.s32.totalorder %s46, 3
        %s878 = scalar_select %p877, %s46, 3
        %s879 = scalar_lea.vmem %s12, %s878
        %p880 = pneg %p381
        %p881 = pneg %p378
        %p882 = scmp.lt.s32.totalorder %s46, 3
        %s883 = scalar_select %p882, %s46, 3
        %s884 = scalar_lea.vmem %s13, %s883
        %p885 = pneg %p407
        %p886 = pneg %p404
        %p887 = scmp.lt.s32.totalorder %s46, 3
        %s888 = scalar_select %p887, %s46, 3
        %s889 = smul.addr %s888, 4
        %s890 = smul.addr %s889, 8
        %s891 = scalar_lea.vmem %s14, %s890
        %p892 = pneg %p433
        %p893 = pneg %p430
        %p894 = scmp.lt.s32.totalorder %s46, 3
        %s895 = scalar_select %p894, %s46, 3
        %s896 = scalar_lea.vmem %s15, %s895
        %p897 = pneg %p459
        %p898 = pneg %p456
        %p899 = scmp.lt.s32.totalorder %s46, 3
        %s900 = scalar_select %p899, %s46, 3
        %s901 = smul.addr %s900, 8
        %s902 = smul.addr %s901, 8
        %s903 = scalar_lea.vmem %s16, %s902
        %p904 = pneg %p485
        %p905 = pneg %p482
        %p906 = scmp.lt.s32.totalorder %s46, 3
        %s907 = scalar_select %p906, %s46, 3
        %s908 = scalar_lea.vmem %s17, %s907
        %p909 = pneg %p511
        %p910 = pneg %p508
        %p911 = pneg %p532
        %p912 = pneg %p529
        %p913 = pneg %p553
        %p914 = pneg %p550
        %p915 = pneg %p574
        %p916 = pneg %p571
        %p917 = pneg %p595
        %p918 = pneg %p592
        %p919 = pneg %p621
        %p920 = pneg %p618
        %s921 = sand.u32 %s608, 1
        %s922 = scalar_lea.sflag [#allocation4], %s921
        %s923 = sand.u32 %s608, 1
        %s924 = smul.addr %s923, 8
        %s925 = scalar_lea.vmem [#allocation3], %s924
        %p926 = pneg %p649
        %p927 = pneg %p646
        %s928 = sand.u32 %s636, 1
        %s929 = scalar_lea.sflag [#allocation6], %s928
        %s930 = sand.u32 %s636, 1
        %s931 = smul.addr %s930, 16
        %s932 = scalar_lea.vmem [#allocation5], %s931
        %p933 = scmp.lt.s32.totalorder %s45, 1
        %s934 = scalar_select %p933, %s45, 1
        %s935 = smul.addr %s934, 8
        %s936 = scalar_lea.vmem %s0, %s935
        %p937 = scmp.lt.s32.totalorder %s46, 3
        %s938 = scalar_select %p937, %s46, 3
        %s939 = scalar_lea.vmem %s2, %s938
        %p940 = scmp.lt.s32.totalorder %s46, 3
        %s941 = scalar_select %p940, %s46, 3
        %s942 = scalar_lea.vmem %s3, %s941
        %p943 = scmp.lt.s32.totalorder %s46, 3
        %s944 = scalar_select %p943, %s46, 3
        %s945 = smul.addr %s944, 8
        %s946 = smul.addr %s945, 8
        %s947 = scalar_lea.vmem %s4, %s946
        %p948 = scmp.lt.s32.totalorder %s46, 3
        %s949 = scalar_select %p948, %s46, 3
        %s950 = smul.addr %s949, 2
        %s951 = scalar_lea.vmem %s5, %s950
        %p952 = scmp.lt.s32.totalorder %s46, 3
        %s953 = scalar_select %p952, %s46, 3
        %s954 = smul.addr %s953, 8
        %s955 = smul.addr %s954, 8
        %s956 = scalar_lea.vmem %s6, %s955
        %p957 = scmp.lt.s32.totalorder %s46, 3
        %s958 = scalar_select %p957, %s46, 3
        %s959 = smul.addr %s958, 2
        %s960 = scalar_lea.vmem %s7, %s959
        %p961 = scmp.lt.s32.totalorder %s46, 3
        %s962 = scalar_select %p961, %s46, 3
        %s963 = smul.addr %s962, 8
        %s964 = smul.addr %s963, 8
        %s965 = scalar_lea.vmem %s8, %s964
        %p966 = scmp.lt.s32.totalorder %s46, 3
        %s967 = scalar_select %p966, %s46, 3
        %s968 = smul.addr %s967, 2
        %s969 = scalar_lea.vmem %s9, %s968
        %p970 = scmp.lt.s32.totalorder %s46, 3
        %s971 = scalar_select %p970, %s46, 3
        %s972 = smul.addr %s971, 4
        %s973 = smul.addr %s972, 8
        %s974 = scalar_lea.vmem %s10, %s973
        %p975 = scmp.lt.s32.totalorder %s46, 3
        %s976 = scalar_select %p975, %s46, 3
        %s977 = scalar_lea.vmem %s11, %s976
        %p978 = scmp.lt.s32.totalorder %s46, 3
        %s979 = scalar_select %p978, %s46, 3
        %s980 = scalar_lea.vmem %s12, %s979
        %p981 = scmp.lt.s32.totalorder %s46, 3
        %s982 = scalar_select %p981, %s46, 3
        %s983 = scalar_lea.vmem %s13, %s982
        %p984 = scmp.lt.s32.totalorder %s46, 3
        %s985 = scalar_select %p984, %s46, 3
        %s986 = smul.addr %s985, 4
        %s987 = smul.addr %s986, 8
        %s988 = scalar_lea.vmem %s14, %s987
        %p989 = scmp.lt.s32.totalorder %s46, 3
        %s990 = scalar_select %p989, %s46, 3
        %s991 = scalar_lea.vmem %s15, %s990
        %p992 = scmp.lt.s32.totalorder %s46, 3
        %s993 = scalar_select %p992, %s46, 3
        %s994 = smul.addr %s993, 8
        %s995 = smul.addr %s994, 8
        %s996 = scalar_lea.vmem %s16, %s995
        %p997 = scmp.lt.s32.totalorder %s46, 3
        %s998 = scalar_select %p997, %s46, 3
        %s999 = scalar_lea.vmem %s17, %s998
        %p1000 = scmp.eq.s32.totalorder %s46, 0
        // Predicated region
        $region109: #{tpu_custom_call.1} parent=107 // pred_check
          %p1001 = pneg %p1000
        $region110: #{tpu_custom_call.1} parent=107 // pred_check_branch
          %1003 = sbr.rel (%p1001) target = $region112
        $region111: #{tpu_custom_call.1} parent=107 // pred_region
          %v1004 = vld [vmem:[%s936] sm:$0xff]
          %v1005 = vld [vmem:[%s1] sm:$0xff]
          %v1006 = vadd.f32 %v1004, %v1005
          %vm1007 = vcmask 261120
          %1008 = vst.msk [vmem:[#allocation2] sm:$0xff] %vm1007, %v1006
        $region112: #{tpu_custom_call.1} parent=107 // pred_fallthru
          _
        %v1009 = vld [vmem:[#allocation2] sm:$0xff]
        %v1010 = vld [vmem:[%s939] sm:$0x1]
        %v1011 = vld [vmem:[%s942] sm:$0x1]
        %vm1012 = vcmask 261120
        %v1013 = vsel %vm1012, %v1009, 0.0
        %1014 = vadd.xlane.f32.xlu0 %v1013
        %v1015 = vpop.xlane.xlu0 %1014
        %v1016 = vrcp.pop 32.0
        %v1017 = vmul.f32 %v1015, %v1016
        %v1018 = vsub.f32 %v1009, %v1017
        %v1019 = vmul.f32 %v1018, %v1018
        %v1020 = vsel %vm1012, %v1019, 0.0
        %1021 = vadd.xlane.f32.xlu0 %v1020
        %v1022 = vpop.xlane.xlu0 %1021
        %v1023 = vmul.f32 %v1022, %v1016
        %v1024 = vadd.f32 %v1023, 1e-05
        %v1025 = vrsqrt.pop %v1024
        %v1026 = vmul.f32 %v1018, %v1025
        %v1028 = vlaneseq
        %v1029 = vshrl.u32 %v1028, 7
        %v1030 = vsub.s32 0, %v1029
        %v1031 = vrot.slane %v1010, %v1030
        %v1033 = vmul.f32 %v1026, %v1031
        %v1035 = vlaneseq
        %v1036 = vshrl.u32 %v1035, 7
        %v1037 = vsub.s32 0, %v1036
        %v1038 = vrot.slane %v1011, %v1037
        %v1040 = vadd.f32 %v1033, %v1038
        %v1041 = vld [vmem:[%s947] sm:$0xff]
        %v1042 = vld [vmem:[%s947 + $0x8] sm:$0xff]
        %v1043 = vld [vmem:[%s947 + $0x10] sm:$0xff]
        %v1044 = vld [vmem:[%s947 + $0x18] sm:$0xff]
        %v1045 = vld [vmem:[%s947 + $0x20] sm:$0xff]
        %v1046 = vld [vmem:[%s947 + $0x28] sm:$0xff]
        %v1047 = vld [vmem:[%s947 + $0x30] sm:$0xff]
        %v1048 = vld [vmem:[%s947 + $0x38] sm:$0xff]
        %v1049 = vld [vmem:[%s951] sm:$0x1]
        %v1050 = vld [vmem:[%s951 + $0x1] sm:$0x1]
        %v1053 = vlaneseq
        %v1054 = vshrl.u32 %v1053, 7
        %v1055 = vsub.s32 0, %v1054
        %v1056 = vrot.slane %v1049, %v1055
        %v1057 = vlaneseq
        %v1058 = vshrl.u32 %v1057, 7
        %v1059 = vsub.s32 0, %v1058
        %v1060 = vrot.slane %v1050, %v1059
        %v1064 = vsel %vm1012, %v1040, 0
        %1066 = vmatprep.subr.mxu0 0.0
        %1067 = vmatpush1.msra.mxu0 %v1041
        %1068 = vmatprep.subr.mxu0 0.0
        %1069 = vmatpush1.msra.mxu0 %v1042
        %1070 = vmatprep.subr.mxu0 0.0
        %1071 = vmatpush1.msra.mxu0 %v1043
        %1072 = vmatprep.subr.mxu0 0.0
        %1073 = vmatpush1.msra.mxu0 %v1044
        %1074 = vmatprep.subr.mxu0 0.0
        %1075 = vmatpush1.msra.mxu0 0.0
        %1076 = vmatprep.subr.mxu0 0.0
        %1077 = vmatpush1.msra.mxu0 0.0
        %1078 = vmatprep.subr.mxu0 0.0
        %1079 = vmatpush1.msra.mxu0 0.0
        %1080 = vmatprep.subr.mxu0 0.0
        %1081 = vmatpush1.msra.mxu0 0.0
        %1082 = vmatprep.subr.mxu0 0.0
        %1083 = vmatpush1.msra.mxu0 0.0
        %1084 = vmatprep.subr.mxu0 0.0
        %1085 = vmatpush1.msra.mxu0 0.0
        %1086 = vmatprep.subr.mxu0 0.0
        %1087 = vmatpush1.msra.mxu0 0.0
        %1088 = vmatprep.subr.mxu0 0.0
        %1089 = vmatpush1.msra.mxu0 0.0
        %1090 = vmatprep.subr.mxu0 0.0
        %1091 = vmatpush1.msra.mxu0 0.0
        %1092 = vmatprep.subr.mxu0 0.0
        %1093 = vmatpush1.msra.mxu0 0.0
        %1094 = vmatprep.subr.mxu0 0.0
        %1095 = vmatpush1.msra.mxu0 0.0
        %1096 = vmatprep.subr.mxu0 0.0
        %1097 = vmatpush1.msra.mxu0 0.0
        %1098 = vmatprep.subr.mxu0 0.0
        %1099 = vmatpush1.msra.mxu0 0.0
        %1100 = vmatprep.subr.mxu0 0.0
        %1101 = vmatpush1.msra.mxu0 0.0
        %1102 = vmatprep.subr.mxu0 0.0
        %1103 = vmatpush1.msra.mxu0 0.0
        %1104 = vmatprep.subr.mxu0 0.0
        %1105 = vmatpush1.msra.mxu0 0.0
        %1106 = vmatprep.subr.mxu0 0.0
        %1107 = vmatpush1.msra.mxu0 0.0
        %1108 = vmatprep.subr.mxu0 0.0
        %1109 = vmatpush1.msra.mxu0 0.0
        %1110 = vmatprep.subr.mxu0 0.0
        %1111 = vmatpush1.msra.mxu0 0.0
        %1112 = vmatprep.subr.mxu0 0.0
        %1113 = vmatpush1.msra.mxu0 0.0
        %1114 = vmatprep.subr.mxu0 0.0
        %1115 = vmatpush1.msra.mxu0 0.0
        %1116 = vmatprep.subr.mxu0 0.0
        %1117 = vmatpush1.msra.mxu0 0.0
        %1118 = vmatprep.subr.mxu0 0.0
        %1119 = vmatpush1.msra.mxu0 0.0
        %1120 = vmatprep.subr.mxu0 0.0
        %1121 = vmatpush1.msra.mxu0 0.0
        %1122 = vmatprep.subr.mxu0 0.0
        %1123 = vmatpush1.msra.mxu0 0.0
        %1124 = vmatprep.subr.mxu0 0.0
        %1125 = vmatpush1.msra.mxu0 0.0
        %1126 = vmatprep.subr.mxu0 0.0
        %1127 = vmatpush1.msra.mxu0 0.0
        %1128 = vmatprep.subr.mxu0 0.0
        %1129 = vmatpush1.msra.mxu0 0.0
        %1130 = vmatprep.mubr.f32.mxu0 0.0
        %1131 = vmatmul.mubr.f32.gmra.mrb[0].mxu0 %v1064
        %v1132 = vpop.f32.mrb[0].mxu0
        %v1133 = vadd.f32 %v1056, %v1132
        %v1134 = vpop.f32.mrb[0].mxu0
        %1135 = vdwg.mxu0
        %1136 = vmatprep.subr.mxu0 0.0
        %1137 = vmatpush1.msra.mxu0 %v1045
        %1138 = vmatprep.subr.mxu0 0.0
        %1139 = vmatpush1.msra.mxu0 %v1046
        %1140 = vmatprep.subr.mxu0 0.0
        %1141 = vmatpush1.msra.mxu0 %v1047
        %1142 = vmatprep.subr.mxu0 0.0
        %1143 = vmatpush1.msra.mxu0 %v1048
        %1144 = vmatprep.subr.mxu0 0.0
        %1145 = vmatpush1.msra.mxu0 0.0
        %1146 = vmatprep.subr.mxu0 0.0
        %1147 = vmatpush1.msra.mxu0 0.0
        %1148 = vmatprep.subr.mxu0 0.0
        %1149 = vmatpush1.msra.mxu0 0.0
        %1150 = vmatprep.subr.mxu0 0.0
        %1151 = vmatpush1.msra.mxu0 0.0
        %1152 = vmatprep.subr.mxu0 0.0
        %1153 = vmatpush1.msra.mxu0 0.0
        %1154 = vmatprep.subr.mxu0 0.0
        %1155 = vmatpush1.msra.mxu0 0.0
        %1156 = vmatprep.subr.mxu0 0.0
        %1157 = vmatpush1.msra.mxu0 0.0
        %1158 = vmatprep.subr.mxu0 0.0
        %1159 = vmatpush1.msra.mxu0 0.0
        %1160 = vmatprep.subr.mxu0 0.0
        %1161 = vmatpush1.msra.mxu0 0.0
        %1162 = vmatprep.subr.mxu0 0.0
        %1163 = vmatpush1.msra.mxu0 0.0
        %1164 = vmatprep.subr.mxu0 0.0
        %1165 = vmatpush1.msra.mxu0 0.0
        %1166 = vmatprep.subr.mxu0 0.0
        %1167 = vmatpush1.msra.mxu0 0.0
        %1168 = vmatprep.subr.mxu0 0.0
        %1169 = vmatpush1.msra.mxu0 0.0
        %1170 = vmatprep.subr.mxu0 0.0
        %1171 = vmatpush1.msra.mxu0 0.0
        %1172 = vmatprep.subr.mxu0 0.0
        %1173 = vmatpush1.msra.mxu0 0.0
        %1174 = vmatprep.subr.mxu0 0.0
        %1175 = vmatpush1.msra.mxu0 0.0
        %1176 = vmatprep.subr.mxu0 0.0
        %1177 = vmatpush1.msra.mxu0 0.0
        %1178 = vmatprep.subr.mxu0 0.0
        %1179 = vmatpush1.msra.mxu0 0.0
        %1180 = vmatprep.subr.mxu0 0.0
        %1181 = vmatpush1.msra.mxu0 0.0
        %1182 = vmatprep.subr.mxu0 0.0
        %1183 = vmatpush1.msra.mxu0 0.0
        %1184 = vmatprep.subr.mxu0 0.0
        %1185 = vmatpush1.msra.mxu0 0.0
        %1186 = vmatprep.subr.mxu0 0.0
        %1187 = vmatpush1.msra.mxu0 0.0
        %1188 = vmatprep.subr.mxu0 0.0
        %1189 = vmatpush1.msra.mxu0 0.0
        %1190 = vmatprep.subr.mxu0 0.0
        %1191 = vmatpush1.msra.mxu0 0.0
        %1192 = vmatprep.subr.mxu0 0.0
        %1193 = vmatpush1.msra.mxu0 0.0
        %1194 = vmatprep.subr.mxu0 0.0
        %1195 = vmatpush1.msra.mxu0 0.0
        %1196 = vmatprep.subr.mxu0 0.0
        %1197 = vmatpush1.msra.mxu0 0.0
        %1198 = vmatprep.subr.mxu0 0.0
        %1199 = vmatpush1.msra.mxu0 0.0
        %1200 = vmatprep.mubr.f32.mxu0 0.0
        %1201 = vmatmul.mubr.f32.gmra.mrb[0].mxu0 %v1064
        %v1202 = vpop.f32.mrb[0].mxu0
        %v1203 = vadd.f32 %v1060, %v1202
        %v1204 = vpop.f32.mrb[0].mxu0
        %1205 = vdwg.mxu0
        %v1206 = vld [vmem:[%s956] sm:$0xff]
        %v1207 = vld [vmem:[%s956 + $0x8] sm:$0xff]
        %v1208 = vld [vmem:[%s956 + $0x10] sm:$0xff]
        %v1209 = vld [vmem:[%s956 + $0x18] sm:$0xff]
        %v1210 = vld [vmem:[%s956 + $0x20] sm:$0xff]
        %v1211 = vld [vmem:[%s956 + $0x28] sm:$0xff]
        %v1212 = vld [vmem:[%s956 + $0x30] sm:$0xff]
        %v1213 = vld [vmem:[%s956 + $0x38] sm:$0xff]
        %v1214 = vld [vmem:[%s960] sm:$0x1]
        %v1215 = vld [vmem:[%s960 + $0x1] sm:$0x1]
        %v1218 = vlaneseq
        %v1219 = vshrl.u32 %v1218, 7
        %v1220 = vsub.s32 0, %v1219
        %v1221 = vrot.slane %v1214, %v1220
        %v1222 = vlaneseq
        %v1223 = vshrl.u32 %v1222, 7
        %v1224 = vsub.s32 0, %v1223
        %v1225 = vrot.slane %v1215, %v1224
        %1228 = vmatprep.subr.mxu0 0.0
        %1229 = vmatpush1.msra.mxu0 %v1206
        %1230 = vmatprep.subr.mxu0 0.0
        %1231 = vmatpush1.msra.mxu0 %v1207
        %1232 = vmatprep.subr.mxu0 0.0
        %1233 = vmatpush1.msra.mxu0 %v1208
        %1234 = vmatprep.subr.mxu0 0.0
        %1235 = vmatpush1.msra.mxu0 %v1209
        %1236 = vmatprep.subr.mxu0 0.0
        %1237 = vmatpush1.msra.mxu0 0.0
        %1238 = vmatprep.subr.mxu0 0.0
        %1239 = vmatpush1.msra.mxu0 0.0
        %1240 = vmatprep.subr.mxu0 0.0
        %1241 = vmatpush1.msra.mxu0 0.0
        %1242 = vmatprep.subr.mxu0 0.0
        %1243 = vmatpush1.msra.mxu0 0.0
        %1244 = vmatprep.subr.mxu0 0.0
        %1245 = vmatpush1.msra.mxu0 0.0
        %1246 = vmatprep.subr.mxu0 0.0
        %1247 = vmatpush1.msra.mxu0 0.0
        %1248 = vmatprep.subr.mxu0 0.0
        %1249 = vmatpush1.msra.mxu0 0.0
        %1250 = vmatprep.subr.mxu0 0.0
        %1251 = vmatpush1.msra.mxu0 0.0
        %1252 = vmatprep.subr.mxu0 0.0
        %1253 = vmatpush1.msra.mxu0 0.0
        %1254 = vmatprep.subr.mxu0 0.0
        %1255 = vmatpush1.msra.mxu0 0.0
        %1256 = vmatprep.subr.mxu0 0.0
        %1257 = vmatpush1.msra.mxu0 0.0
        %1258 = vmatprep.subr.mxu0 0.0
        %1259 = vmatpush1.msra.mxu0 0.0
        %1260 = vmatprep.subr.mxu0 0.0
        %1261 = vmatpush1.msra.mxu0 0.0
        %1262 = vmatprep.subr.mxu0 0.0
        %1263 = vmatpush1.msra.mxu0 0.0
        %1264 = vmatprep.subr.mxu0 0.0
        %1265 = vmatpush1.msra.mxu0 0.0
        %1266 = vmatprep.subr.mxu0 0.0
        %1267 = vmatpush1.msra.mxu0 0.0
        %1268 = vmatprep.subr.mxu0 0.0
        %1269 = vmatpush1.msra.mxu0 0.0
        %1270 = vmatprep.subr.mxu0 0.0
        %1271 = vmatpush1.msra.mxu0 0.0
        %1272 = vmatprep.subr.mxu0 0.0
        %1273 = vmatpush1.msra.mxu0 0.0
        %1274 = vmatprep.subr.mxu0 0.0
        %1275 = vmatpush1.msra.mxu0 0.0
        %1276 = vmatprep.subr.mxu0 0.0
        %1277 = vmatpush1.msra.mxu0 0.0
        %1278 = vmatprep.subr.mxu0 0.0
        %1279 = vmatpush1.msra.mxu0 0.0
        %1280 = vmatprep.subr.mxu0 0.0
        %1281 = vmatpush1.msra.mxu0 0.0
        %1282 = vmatprep.subr.mxu0 0.0
        %1283 = vmatpush1.msra.mxu0 0.0
        %1284 = vmatprep.subr.mxu0 0.0
        %1285 = vmatpush1.msra.mxu0 0.0
        %1286 = vmatprep.subr.mxu0 0.0
        %1287 = vmatpush1.msra.mxu0 0.0
        %1288 = vmatprep.subr.mxu0 0.0
        %1289 = vmatpush1.msra.mxu0 0.0
        %1290 = vmatprep.subr.mxu0 0.0
        %1291 = vmatpush1.msra.mxu0 0.0
        %1292 = vmatprep.mubr.f32.mxu0 0.0
        %1293 = vmatmul.mubr.f32.gmra.mrb[0].mxu0 %v1064
        %v1294 = vpop.f32.mrb[0].mxu0
        %v1295 = vadd.f32 %v1221, %v1294
        %v1296 = vpop.f32.mrb[0].mxu0
        %1297 = vdwg.mxu0
        %1298 = vmatprep.subr.mxu0 0.0
        %1299 = vmatpush1.msra.mxu0 %v1210
        %1300 = vmatprep.subr.mxu0 0.0
        %1301 = vmatpush1.msra.mxu0 %v1211
        %1302 = vmatprep.subr.mxu0 0.0
        %1303 = vmatpush1.msra.mxu0 %v1212
        %1304 = vmatprep.subr.mxu0 0.0
        %1305 = vmatpush1.msra.mxu0 %v1213
        %1306 = vmatprep.subr.mxu0 0.0
        %1307 = vmatpush1.msra.mxu0 0.0
        %1308 = vmatprep.subr.mxu0 0.0
        %1309 = vmatpush1.msra.mxu0 0.0
        %1310 = vmatprep.subr.mxu0 0.0
        %1311 = vmatpush1.msra.mxu0 0.0
        %1312 = vmatprep.subr.mxu0 0.0
        %1313 = vmatpush1.msra.mxu0 0.0
        %1314 = vmatprep.subr.mxu0 0.0
        %1315 = vmatpush1.msra.mxu0 0.0
        %1316 = vmatprep.subr.mxu0 0.0
        %1317 = vmatpush1.msra.mxu0 0.0
        %1318 = vmatprep.subr.mxu0 0.0
        %1319 = vmatpush1.msra.mxu0 0.0
        %1320 = vmatprep.subr.mxu0 0.0
        %1321 = vmatpush1.msra.mxu0 0.0
        %1322 = vmatprep.subr.mxu0 0.0
        %1323 = vmatpush1.msra.mxu0 0.0
        %1324 = vmatprep.subr.mxu0 0.0
        %1325 = vmatpush1.msra.mxu0 0.0
        %1326 = vmatprep.subr.mxu0 0.0
        %1327 = vmatpush1.msra.mxu0 0.0
        %1328 = vmatprep.subr.mxu0 0.0
        %1329 = vmatpush1.msra.mxu0 0.0
        %1330 = vmatprep.subr.mxu0 0.0
        %1331 = vmatpush1.msra.mxu0 0.0
        %1332 = vmatprep.subr.mxu0 0.0
        %1333 = vmatpush1.msra.mxu0 0.0
        %1334 = vmatprep.subr.mxu0 0.0
        %1335 = vmatpush1.msra.mxu0 0.0
        %1336 = vmatprep.subr.mxu0 0.0
        %1337 = vmatpush1.msra.mxu0 0.0
        %1338 = vmatprep.subr.mxu0 0.0
        %1339 = vmatpush1.msra.mxu0 0.0
        %1340 = vmatprep.subr.mxu0 0.0
        %1341 = vmatpush1.msra.mxu0 0.0
        %1342 = vmatprep.subr.mxu0 0.0
        %1343 = vmatpush1.msra.mxu0 0.0
        %1344 = vmatprep.subr.mxu0 0.0
        %1345 = vmatpush1.msra.mxu0 0.0
        %1346 = vmatprep.subr.mxu0 0.0
        %1347 = vmatpush1.msra.mxu0 0.0
        %1348 = vmatprep.subr.mxu0 0.0
        %1349 = vmatpush1.msra.mxu0 0.0
        %1350 = vmatprep.subr.mxu0 0.0
        %1351 = vmatpush1.msra.mxu0 0.0
        %1352 = vmatprep.subr.mxu0 0.0
        %1353 = vmatpush1.msra.mxu0 0.0
        %1354 = vmatprep.subr.mxu0 0.0
        %1355 = vmatpush1.msra.mxu0 0.0
        %1356 = vmatprep.subr.mxu0 0.0
        %1357 = vmatpush1.msra.mxu0 0.0
        %1358 = vmatprep.subr.mxu0 0.0
        %1359 = vmatpush1.msra.mxu0 0.0
        %1360 = vmatprep.subr.mxu0 0.0
        %1361 = vmatpush1.msra.mxu0 0.0
        %1362 = vmatprep.mubr.f32.mxu0 0.0
        %1363 = vmatmul.mubr.f32.gmra.mrb[0].mxu0 %v1064
        %v1364 = vpop.f32.mrb[0].mxu0
        %v1365 = vadd.f32 %v1225, %v1364
        %v1366 = vpop.f32.mrb[0].mxu0
        %1367 = vdwg.mxu0
        %v1368 = vld [vmem:[%s965] sm:$0xff]
        %v1369 = vld [vmem:[%s965 + $0x8] sm:$0xff]
        %v1370 = vld [vmem:[%s965 + $0x10] sm:$0xff]
        %v1371 = vld [vmem:[%s965 + $0x18] sm:$0xff]
        %v1372 = vld [vmem:[%s965 + $0x20] sm:$0xff]
        %v1373 = vld [vmem:[%s965 + $0x28] sm:$0xff]
        %v1374 = vld [vmem:[%s965 + $0x30] sm:$0xff]
        %v1375 = vld [vmem:[%s965 + $0x38] sm:$0xff]
        %v1376 = vld [vmem:[%s969] sm:$0x1]
        %v1377 = vld [vmem:[%s969 + $0x1] sm:$0x1]
        %v1380 = vlaneseq
        %v1381 = vshrl.u32 %v1380, 7
        %v1382 = vsub.s32 0, %v1381
        %v1383 = vrot.slane %v1376, %v1382
        %v1384 = vlaneseq
        %v1385 = vshrl.u32 %v1384, 7
        %v1386 = vsub.s32 0, %v1385
        %v1387 = vrot.slane %v1377, %v1386
        %1390 = vmatprep.subr.mxu0 0.0
        %1391 = vmatpush1.msra.mxu0 %v1368
        %1392 = vmatprep.subr.mxu0 0.0
        %1393 = vmatpush1.msra.mxu0 %v1369
        %1394 = vmatprep.subr.mxu0 0.0
        %1395 = vmatpush1.msra.mxu0 %v1370
        %1396 = vmatprep.subr.mxu0 0.0
        %1397 = vmatpush1.msra.mxu0 %v1371
        %1398 = vmatprep.subr.mxu0 0.0
        %1399 = vmatpush1.msra.mxu0 0.0
        %1400 = vmatprep.subr.mxu0 0.0
        %1401 = vmatpush1.msra.mxu0 0.0
        %1402 = vmatprep.subr.mxu0 0.0
        %1403 = vmatpush1.msra.mxu0 0.0
        %1404 = vmatprep.subr.mxu0 0.0
        %1405 = vmatpush1.msra.mxu0 0.0
        %1406 = vmatprep.subr.mxu0 0.0
        %1407 = vmatpush1.msra.mxu0 0.0
        %1408 = vmatprep.subr.mxu0 0.0
        %1409 = vmatpush1.msra.mxu0 0.0
        %1410 = vmatprep.subr.mxu0 0.0
        %1411 = vmatpush1.msra.mxu0 0.0
        %1412 = vmatprep.subr.mxu0 0.0
        %1413 = vmatpush1.msra.mxu0 0.0
        %1414 = vmatprep.subr.mxu0 0.0
        %1415 = vmatpush1.msra.mxu0 0.0
        %1416 = vmatprep.subr.mxu0 0.0
        %1417 = vmatpush1.msra.mxu0 0.0
        %1418 = vmatprep.subr.mxu0 0.0
        %1419 = vmatpush1.msra.mxu0 0.0
        %1420 = vmatprep.subr.mxu0 0.0
        %1421 = vmatpush1.msra.mxu0 0.0
        %1422 = vmatprep.subr.mxu0 0.0
        %1423 = vmatpush1.msra.mxu0 0.0
        %1424 = vmatprep.subr.mxu0 0.0
        %1425 = vmatpush1.msra.mxu0 0.0
        %1426 = vmatprep.subr.mxu0 0.0
        %1427 = vmatpush1.msra.mxu0 0.0
        %1428 = vmatprep.subr.mxu0 0.0
        %1429 = vmatpush1.msra.mxu0 0.0
        %1430 = vmatprep.subr.mxu0 0.0
        %1431 = vmatpush1.msra.mxu0 0.0
        %1432 = vmatprep.subr.mxu0 0.0
        %1433 = vmatpush1.msra.mxu0 0.0
        %1434 = vmatprep.subr.mxu0 0.0
        %1435 = vmatpush1.msra.mxu0 0.0
        %1436 = vmatprep.subr.mxu0 0.0
        %1437 = vmatpush1.msra.mxu0 0.0
        %1438 = vmatprep.subr.mxu0 0.0
        %1439 = vmatpush1.msra.mxu0 0.0
        %1440 = vmatprep.subr.mxu0 0.0
        %1441 = vmatpush1.msra.mxu0 0.0
        %1442 = vmatprep.subr.mxu0 0.0
        %1443 = vmatpush1.msra.mxu0 0.0
        %1444 = vmatprep.subr.mxu0 0.0
        %1445 = vmatpush1.msra.mxu0 0.0
        %1446 = vmatprep.subr.mxu0 0.0
        %1447 = vmatpush1.msra.mxu0 0.0
        %1448 = vmatprep.subr.mxu0 0.0
        %1449 = vmatpush1.msra.mxu0 0.0
        %1450 = vmatprep.subr.mxu0 0.0
        %1451 = vmatpush1.msra.mxu0 0.0
        %1452 = vmatprep.subr.mxu0 0.0
        %1453 = vmatpush1.msra.mxu0 0.0
        %1454 = vmatprep.mubr.f32.mxu0 0.0
        %1455 = vmatmul.mubr.f32.gmra.mrb[0].mxu0 %v1064
        %v1456 = vpop.f32.mrb[0].mxu0
        %v1457 = vadd.f32 %v1383, %v1456
        %v1458 = vpop.f32.mrb[0].mxu0
        %1459 = vdwg.mxu0
        %1460 = vmatprep.subr.mxu0 0.0
        %1461 = vmatpush1.msra.mxu0 %v1372
        %1462 = vmatprep.subr.mxu0 0.0
        %1463 = vmatpush1.msra.mxu0 %v1373
        %1464 = vmatprep.subr.mxu0 0.0
        %1465 = vmatpush1.msra.mxu0 %v1374
        %1466 = vmatprep.subr.mxu0 0.0
        %1467 = vmatpush1.msra.mxu0 %v1375
        %1468 = vmatprep.subr.mxu0 0.0
        %1469 = vmatpush1.msra.mxu0 0.0
        %1470 = vmatprep.subr.mxu0 0.0
        %1471 = vmatpush1.msra.mxu0 0.0
        %1472 = vmatprep.subr.mxu0 0.0
        %1473 = vmatpush1.msra.mxu0 0.0
        %1474 = vmatprep.subr.mxu0 0.0
        %1475 = vmatpush1.msra.mxu0 0.0
        %1476 = vmatprep.subr.mxu0 0.0
        %1477 = vmatpush1.msra.mxu0 0.0
        %1478 = vmatprep.subr.mxu0 0.0
        %1479 = vmatpush1.msra.mxu0 0.0
        %1480 = vmatprep.subr.mxu0 0.0
        %1481 = vmatpush1.msra.mxu0 0.0
        %1482 = vmatprep.subr.mxu0 0.0
        %1483 = vmatpush1.msra.mxu0 0.0
        %1484 = vmatprep.subr.mxu0 0.0
        %1485 = vmatpush1.msra.mxu0 0.0
        %1486 = vmatprep.subr.mxu0 0.0
        %1487 = vmatpush1.msra.mxu0 0.0
        %1488 = vmatprep.subr.mxu0 0.0
        %1489 = vmatpush1.msra.mxu0 0.0
        %1490 = vmatprep.subr.mxu0 0.0
        %1491 = vmatpush1.msra.mxu0 0.0
        %1492 = vmatprep.subr.mxu0 0.0
        %1493 = vmatpush1.msra.mxu0 0.0
        %1494 = vmatprep.subr.mxu0 0.0
        %1495 = vmatpush1.msra.mxu0 0.0
        %1496 = vmatprep.subr.mxu0 0.0
        %1497 = vmatpush1.msra.mxu0 0.0
        %1498 = vmatprep.subr.mxu0 0.0
        %1499 = vmatpush1.msra.mxu0 0.0
        %1500 = vmatprep.subr.mxu0 0.0
        %1501 = vmatpush1.msra.mxu0 0.0
        %1502 = vmatprep.subr.mxu0 0.0
        %1503 = vmatpush1.msra.mxu0 0.0
        %1504 = vmatprep.subr.mxu0 0.0
        %1505 = vmatpush1.msra.mxu0 0.0
        %1506 = vmatprep.subr.mxu0 0.0
        %1507 = vmatpush1.msra.mxu0 0.0
        %1508 = vmatprep.subr.mxu0 0.0
        %1509 = vmatpush1.msra.mxu0 0.0
        %1510 = vmatprep.subr.mxu0 0.0
        %1511 = vmatpush1.msra.mxu0 0.0
        %1512 = vmatprep.subr.mxu0 0.0
        %1513 = vmatpush1.msra.mxu0 0.0
        %1514 = vmatprep.subr.mxu0 0.0
        %1515 = vmatpush1.msra.mxu0 0.0
        %1516 = vmatprep.subr.mxu0 0.0
        %1517 = vmatpush1.msra.mxu0 0.0
        %1518 = vmatprep.subr.mxu0 0.0
        %1519 = vmatpush1.msra.mxu0 0.0
        %1520 = vmatprep.subr.mxu0 0.0
        %1521 = vmatpush1.msra.mxu0 0.0
        %1522 = vmatprep.subr.mxu0 0.0
        %1523 = vmatpush1.msra.mxu0 0.0
        %1524 = vmatprep.mubr.f32.mxu0 0.0
        %1525 = vmatmul.mubr.f32.gmra.mrb[0].mxu0 %v1064
        %v1526 = vpop.f32.mrb[0].mxu0
        %v1527 = vadd.f32 %v1387, %v1526
        %v1528 = vpop.f32.mrb[0].mxu0
        %1529 = vdwg.mxu0
        %vm1530 = vcmask 130048
        %v1532 = vsel %vm1530, %v1133, 0
        %v1535 = vsel %vm1530, %v1295, 0
        %1537 = vmatprep.subr.mxu0 0.0
        %1538 = vmatpush1.xpose.msra.mxu0 %v1535
        %1539 = vmatprep.subr.mxu0 0.0
        %1540 = vmatpush1.xpose.msra.mxu0 0.0
        %1541 = vmatprep.subr.mxu0 0.0
        %1542 = vmatpush1.xpose.msra.mxu0 0.0
        %1543 = vmatprep.subr.mxu0 0.0
        %1544 = vmatpush1.xpose.msra.mxu0 0.0
        %1545 = vmatprep.subr.mxu0 0.0
        %1546 = vmatpush1.xpose.msra.mxu0 0.0
        %1547 = vmatprep.subr.mxu0 0.0
        %1548 = vmatpush1.xpose.msra.mxu0 0.0
        %1549 = vmatprep.subr.mxu0 0.0
        %1550 = vmatpush1.xpose.msra.mxu0 0.0
        %1551 = vmatprep.subr.mxu0 0.0
        %1552 = vmatpush1.xpose.msra.mxu0 0.0
        %1553 = vmatprep.subr.mxu0 0.0
        %1554 = vmatpush1.xpose.msra.mxu0 0.0
        %1555 = vmatprep.subr.mxu0 0.0
        %1556 = vmatpush1.xpose.msra.mxu0 0.0
        %1557 = vmatprep.subr.mxu0 0.0
        %1558 = vmatpush1.xpose.msra.mxu0 0.0
        %1559 = vmatprep.subr.mxu0 0.0
        %1560 = vmatpush1.xpose.msra.mxu0 0.0
        %1561 = vmatprep.subr.mxu0 0.0
        %1562 = vmatpush1.xpose.msra.mxu0 0.0
        %1563 = vmatprep.subr.mxu0 0.0
        %1564 = vmatpush1.xpose.msra.mxu0 0.0
        %1565 = vmatprep.subr.mxu0 0.0
        %1566 = vmatpush1.xpose.msra.mxu0 0.0
        %1567 = vmatprep.subr.mxu0 0.0
        %1568 = vmatpush1.xpose.msra.mxu0 0.0
        %1569 = vmatprep.subr.mxu0 0.0
        %1570 = vmatpush1.xpose.msra.mxu0 0.0
        %1571 = vmatprep.subr.mxu0 0.0
        %1572 = vmatpush1.xpose.msra.mxu0 0.0
        %1573 = vmatprep.subr.mxu0 0.0
        %1574 = vmatpush1.xpose.msra.mxu0 0.0
        %1575 = vmatprep.subr.mxu0 0.0
        %1576 = vmatpush1.xpose.msra.mxu0 0.0
        %1577 = vmatprep.subr.mxu0 0.0
        %1578 = vmatpush1.xpose.msra.mxu0 0.0
        %1579 = vmatprep.subr.mxu0 0.0
        %1580 = vmatpush1.xpose.msra.mxu0 0.0
        %1581 = vmatprep.subr.mxu0 0.0
        %1582 = vmatpush1.xpose.msra.mxu0 0.0
        %1583 = vmatprep.subr.mxu0 0.0
        %1584 = vmatpush1.xpose.msra.mxu0 0.0
        %1585 = vmatprep.subr.mxu0 0.0
        %1586 = vmatpush1.xpose.msra.mxu0 0.0
        %1587 = vmatprep.subr.mxu0 0.0
        %1588 = vmatpush1.xpose.msra.mxu0 0.0
        %1589 = vmatprep.subr.mxu0 0.0
        %1590 = vmatpush1.xpose.msra.mxu0 0.0
        %1591 = vmatprep.subr.mxu0 0.0
        %1592 = vmatpush1.xpose.msra.mxu0 0.0
        %1593 = vmatprep.subr.mxu0 0.0
        %1594 = vmatpush1.xpose.msra.mxu0 0.0
        %1595 = vmatprep.subr.mxu0 0.0
        %1596 = vmatpush1.xpose.msra.mxu0 0.0
        %1597 = vmatprep.subr.mxu0 0.0
        %1598 = vmatpush1.xpose.msra.mxu0 0.0
        %1599 = vmatprep.subr.mxu0 0.0
        %1600 = vmatpush1.xpose.msra.mxu0 0.0
        %1601 = vmatprep.mubr.f32.mxu0 0.0
        %1602 = vmatmul.mubr.f32.gmra.mrb[0].mxu0 %v1532
        %v1603 = vpop.f32.mrb[0].mxu0
        %v1604 = vadd.f32 0.0, %v1603
        %v1605 = vpop.f32.mrb[0].mxu0
        %1606 = vdwg.mxu0
        %v1608 = vsel %vm1530, %v1203, 0
        %v1611 = vsel %vm1530, %v1365, 0
        %1613 = vmatprep.subr.mxu0 0.0
        %1614 = vmatpush1.xpose.msra.mxu0 %v1611
        %1615 = vmatprep.subr.mxu0 0.0
        %1616 = vmatpush1.xpose.msra.mxu0 0.0
        %1617 = vmatprep.subr.mxu0 0.0
        %1618 = vmatpush1.xpose.msra.mxu0 0.0
        %1619 = vmatprep.subr.mxu0 0.0
        %1620 = vmatpush1.xpose.msra.mxu0 0.0
        %1621 = vmatprep.subr.mxu0 0.0
        %1622 = vmatpush1.xpose.msra.mxu0 0.0
        %1623 = vmatprep.subr.mxu0 0.0
        %1624 = vmatpush1.xpose.msra.mxu0 0.0
        %1625 = vmatprep.subr.mxu0 0.0
        %1626 = vmatpush1.xpose.msra.mxu0 0.0
        %1627 = vmatprep.subr.mxu0 0.0
        %1628 = vmatpush1.xpose.msra.mxu0 0.0
        %1629 = vmatprep.subr.mxu0 0.0
        %1630 = vmatpush1.xpose.msra.mxu0 0.0
        %1631 = vmatprep.subr.mxu0 0.0
        %1632 = vmatpush1.xpose.msra.mxu0 0.0
        %1633 = vmatprep.subr.mxu0 0.0
        %1634 = vmatpush1.xpose.msra.mxu0 0.0
        %1635 = vmatprep.subr.mxu0 0.0
        %1636 = vmatpush1.xpose.msra.mxu0 0.0
        %1637 = vmatprep.subr.mxu0 0.0
        %1638 = vmatpush1.xpose.msra.mxu0 0.0
        %1639 = vmatprep.subr.mxu0 0.0
        %1640 = vmatpush1.xpose.msra.mxu0 0.0
        %1641 = vmatprep.subr.mxu0 0.0
        %1642 = vmatpush1.xpose.msra.mxu0 0.0
        %1643 = vmatprep.subr.mxu0 0.0
        %1644 = vmatpush1.xpose.msra.mxu0 0.0
        %1645 = vmatprep.subr.mxu0 0.0
        %1646 = vmatpush1.xpose.msra.mxu0 0.0
        %1647 = vmatprep.subr.mxu0 0.0
        %1648 = vmatpush1.xpose.msra.mxu0 0.0
        %1649 = vmatprep.subr.mxu0 0.0
        %1650 = vmatpush1.xpose.msra.mxu0 0.0
        %1651 = vmatprep.subr.mxu0 0.0
        %1652 = vmatpush1.xpose.msra.mxu0 0.0
        %1653 = vmatprep.subr.mxu0 0.0
        %1654 = vmatpush1.xpose.msra.mxu0 0.0
        %1655 = vmatprep.subr.mxu0 0.0
        %1656 = vmatpush1.xpose.msra.mxu0 0.0
        %1657 = vmatprep.subr.mxu0 0.0
        %1658 = vmatpush1.xpose.msra.mxu0 0.0
        %1659 = vmatprep.subr.mxu0 0.0
        %1660 = vmatpush1.xpose.msra.mxu0 0.0
        %1661 = vmatprep.subr.mxu0 0.0
        %1662 = vmatpush1.xpose.msra.mxu0 0.0
        %1663 = vmatprep.subr.mxu0 0.0
        %1664 = vmatpush1.xpose.msra.mxu0 0.0
        %1665 = vmatprep.subr.mxu0 0.0
        %1666 = vmatpush1.xpose.msra.mxu0 0.0
        %1667 = vmatprep.subr.mxu0 0.0
        %1668 = vmatpush1.xpose.msra.mxu0 0.0
        %1669 = vmatprep.subr.mxu0 0.0
        %1670 = vmatpush1.xpose.msra.mxu0 0.0
        %1671 = vmatprep.subr.mxu0 0.0
        %1672 = vmatpush1.xpose.msra.mxu0 0.0
        %1673 = vmatprep.subr.mxu0 0.0
        %1674 = vmatpush1.xpose.msra.mxu0 0.0
        %1675 = vmatprep.subr.mxu0 0.0
        %1676 = vmatpush1.xpose.msra.mxu0 0.0
        %1677 = vmatprep.mubr.f32.mxu0 0.0
        %1678 = vmatmul.mubr.f32.gmra.mrb[0].mxu0 %v1608
        %v1679 = vpop.f32.mrb[0].mxu0
        %v1680 = vadd.f32 0.0, %v1679
        %v1681 = vpop.f32.mrb[0].mxu0
        %1682 = vdwg.mxu0
        %v1683 = vmul.f32 %v1604, 0.25
        %v1684 = vmul.f32 %v1680, 0.25
        %v1685 = vlaneseq
        %v1686 = vshrl.u32 %v1685, 7
        %v1687 = vlaneseq
        %v1688 = vand.u32 %v1687, 127
        %vm1689 = vcmp.ge.s32.totalorder %v1686, %v1688
        %v1690 = vsel %vm1689, 1, 0
        %vm1691 = vcmp.eq.s32.totalorder %v1690, 1
        %v1692 = vsel %vm1691, %v1683, -1e+30
        %v1693 = vsel %vm1691, %v1684, -1e+30
        %vm1694 = vcmask 64512
        %v1695 = vsel %vm1694, %v1692, -inf
        %1696 = vmax.xlane.f32.xlu0 %v1695
        %v1697 = vpop.xlane.xlu0 %1696
        %v1698 = vsel %vm1694, %v1693, -inf
        %1699 = vmax.xlane.f32.xlu0 %v1698
        %v1700 = vpop.xlane.xlu0 %1699
        %v1701 = vsub.f32 %v1692, %v1697
        %v1702 = vsub.f32 %v1693, %v1700
        %v1703 = vmul.f32 %v1701, 1.442695
        %v1704 = vpow.pop %v1703
        %v1705 = vmul.f32 %v1702, 1.442695
        %v1706 = vpow.pop %v1705
        %v1707 = vsel %vm1694, %v1704, 0.0
        %1708 = vadd.xlane.f32.xlu0 %v1707
        %v1709 = vpop.xlane.xlu0 %1708
        %v1710 = vsel %vm1694, %v1706, 0.0
        %1711 = vadd.xlane.f32.xlu0 %v1710
        %v1712 = vpop.xlane.xlu0 %1711
        %v1713 = vrcp.pop %v1709
        %v1714 = vmul.f32 %v1704, %v1713
        %v1715 = vrcp.pop %v1712
        %v1716 = vmul.f32 %v1706, %v1715
        %1717 = vst.msk [vmem:[%s932] sm:$0xff] %vm1694, %v1714
        %1718 = vst.msk [vmem:[%s932 + $0x8] sm:$0xff] %vm1694, %v1716
        %v1720 = vsel %vm1694, %v1714, 0
        %1722 = vmatprep.subr.mxu0 0.0
        %1723 = vmatpush1.msra.mxu0 %v1457
        %1724 = vmatprep.subr.mxu0 0.0
        %1725 = vmatpush1.msra.mxu0 0.0
        %1726 = vmatprep.subr.mxu0 0.0
        %1727 = vmatpush1.msra.mxu0 0.0
        %1728 = vmatprep.subr.mxu0 0.0
        %1729 = vmatpush1.msra.mxu0 0.0
        %1730 = vmatprep.subr.mxu0 0.0
        %1731 = vmatpush1.msra.mxu0 0.0
        %1732 = vmatprep.subr.mxu0 0.0
        %1733 = vmatpush1.msra.mxu0 0.0
        %1734 = vmatprep.subr.mxu0 0.0
        %1735 = vmatpush1.msra.mxu0 0.0
        %1736 = vmatprep.subr.mxu0 0.0
        %1737 = vmatpush1.msra.mxu0 0.0
        %1738 = vmatprep.subr.mxu0 0.0
        %1739 = vmatpush1.msra.mxu0 0.0
        %1740 = vmatprep.subr.mxu0 0.0
        %1741 = vmatpush1.msra.mxu0 0.0
        %1742 = vmatprep.subr.mxu0 0.0
        %1743 = vmatpush1.msra.mxu0 0.0
        %1744 = vmatprep.subr.mxu0 0.0
        %1745 = vmatpush1.msra.mxu0 0.0
        %1746 = vmatprep.subr.mxu0 0.0
        %1747 = vmatpush1.msra.mxu0 0.0
        %1748 = vmatprep.subr.mxu0 0.0
        %1749 = vmatpush1.msra.mxu0 0.0
        %1750 = vmatprep.subr.mxu0 0.0
        %1751 = vmatpush1.msra.mxu0 0.0
        %1752 = vmatprep.subr.mxu0 0.0
        %1753 = vmatpush1.msra.mxu0 0.0
        %1754 = vmatprep.subr.mxu0 0.0
        %1755 = vmatpush1.msra.mxu0 0.0
        %1756 = vmatprep.subr.mxu0 0.0
        %1757 = vmatpush1.msra.mxu0 0.0
        %1758 = vmatprep.subr.mxu0 0.0
        %1759 = vmatpush1.msra.mxu0 0.0
        %1760 = vmatprep.subr.mxu0 0.0
        %1761 = vmatpush1.msra.mxu0 0.0
        %1762 = vmatprep.subr.mxu0 0.0
        %1763 = vmatpush1.msra.mxu0 0.0
        %1764 = vmatprep.subr.mxu0 0.0
        %1765 = vmatpush1.msra.mxu0 0.0
        %1766 = vmatprep.subr.mxu0 0.0
        %1767 = vmatpush1.msra.mxu0 0.0
        %1768 = vmatprep.subr.mxu0 0.0
        %1769 = vmatpush1.msra.mxu0 0.0
        %1770 = vmatprep.subr.mxu0 0.0
        %1771 = vmatpush1.msra.mxu0 0.0
        %1772 = vmatprep.subr.mxu0 0.0
        %1773 = vmatpush1.msra.mxu0 0.0
        %1774 = vmatprep.subr.mxu0 0.0
        %1775 = vmatpush1.msra.mxu0 0.0
        %1776 = vmatprep.subr.mxu0 0.0
        %1777 = vmatpush1.msra.mxu0 0.0
        %1778 = vmatprep.subr.mxu0 0.0
        %1779 = vmatpush1.msra.mxu0 0.0
        %1780 = vmatprep.subr.mxu0 0.0
        %1781 = vmatpush1.msra.mxu0 0.0
        %1782 = vmatprep.subr.mxu0 0.0
        %1783 = vmatpush1.msra.mxu0 0.0
        %1784 = vmatprep.subr.mxu0 0.0
        %1785 = vmatpush1.msra.mxu0 0.0
        %1786 = vmatprep.mubr.f32.mxu0 0.0
        %1787 = vmatmul.mubr.f32.gmra.mrb[0].mxu0 %v1720
        %v1788 = vpop.f32.mrb[0].mxu0
        %v1789 = vadd.f32 0.0, %v1788
        %v1790 = vpop.f32.mrb[0].mxu0
        %1791 = vdwg.mxu0
        %v1793 = vsel %vm1694, %v1716, 0
        %1795 = vmatprep.subr.mxu0 0.0
        %1796 = vmatpush1.msra.mxu0 %v1527
        %1797 = vmatprep.subr.mxu0 0.0
        %1798 = vmatpush1.msra.mxu0 0.0
        %1799 = vmatprep.subr.mxu0 0.0
        %1800 = vmatpush1.msra.mxu0 0.0
        %1801 = vmatprep.subr.mxu0 0.0
        %1802 = vmatpush1.msra.mxu0 0.0
        %1803 = vmatprep.subr.mxu0 0.0
        %1804 = vmatpush1.msra.mxu0 0.0
        %1805 = vmatprep.subr.mxu0 0.0
        %1806 = vmatpush1.msra.mxu0 0.0
        %1807 = vmatprep.subr.mxu0 0.0
        %1808 = vmatpush1.msra.mxu0 0.0
        %1809 = vmatprep.subr.mxu0 0.0
        %1810 = vmatpush1.msra.mxu0 0.0
        %1811 = vmatprep.subr.mxu0 0.0
        %1812 = vmatpush1.msra.mxu0 0.0
        %1813 = vmatprep.subr.mxu0 0.0
        %1814 = vmatpush1.msra.mxu0 0.0
        %1815 = vmatprep.subr.mxu0 0.0
        %1816 = vmatpush1.msra.mxu0 0.0
        %1817 = vmatprep.subr.mxu0 0.0
        %1818 = vmatpush1.msra.mxu0 0.0
        %1819 = vmatprep.subr.mxu0 0.0
        %1820 = vmatpush1.msra.mxu0 0.0
        %1821 = vmatprep.subr.mxu0 0.0
        %1822 = vmatpush1.msra.mxu0 0.0
        %1823 = vmatprep.subr.mxu0 0.0
        %1824 = vmatpush1.msra.mxu0 0.0
        %1825 = vmatprep.subr.mxu0 0.0
        %1826 = vmatpush1.msra.mxu0 0.0
        %1827 = vmatprep.subr.mxu0 0.0
        %1828 = vmatpush1.msra.mxu0 0.0
        %1829 = vmatprep.subr.mxu0 0.0
        %1830 = vmatpush1.msra.mxu0 0.0
        %1831 = vmatprep.subr.mxu0 0.0
        %1832 = vmatpush1.msra.mxu0 0.0
        %1833 = vmatprep.subr.mxu0 0.0
        %1834 = vmatpush1.msra.mxu0 0.0
        %1835 = vmatprep.subr.mxu0 0.0
        %1836 = vmatpush1.msra.mxu0 0.0
        %1837 = vmatprep.subr.mxu0 0.0
        %1838 = vmatpush1.msra.mxu0 0.0
        %1839 = vmatprep.subr.mxu0 0.0
        %1840 = vmatpush1.msra.mxu0 0.0
        %1841 = vmatprep.subr.mxu0 0.0
        %1842 = vmatpush1.msra.mxu0 0.0
        %1843 = vmatprep.subr.mxu0 0.0
        %1844 = vmatpush1.msra.mxu0 0.0
        %1845 = vmatprep.subr.mxu0 0.0
        %1846 = vmatpush1.msra.mxu0 0.0
        %1847 = vmatprep.subr.mxu0 0.0
        %1848 = vmatpush1.msra.mxu0 0.0
        %1849 = vmatprep.subr.mxu0 0.0
        %1850 = vmatpush1.msra.mxu0 0.0
        %1851 = vmatprep.subr.mxu0 0.0
        %1852 = vmatpush1.msra.mxu0 0.0
        %1853 = vmatprep.subr.mxu0 0.0
        %1854 = vmatpush1.msra.mxu0 0.0
        %1855 = vmatprep.subr.mxu0 0.0
        %1856 = vmatpush1.msra.mxu0 0.0
        %1857 = vmatprep.subr.mxu0 0.0
        %1858 = vmatpush1.msra.mxu0 0.0
        %1859 = vmatprep.mubr.f32.mxu0 0.0
        %1860 = vmatmul.mubr.f32.gmra.mrb[0].mxu0 %v1793
        %v1861 = vpop.f32.mrb[0].mxu0
        %v1862 = vadd.f32 0.0, %v1861
        %v1863 = vpop.f32.mrb[0].mxu0
        %1864 = vdwg.mxu0
        %v1865 = vld [vmem:[%s974] sm:$0xff]
        %v1866 = vld [vmem:[%s974 + $0x8] sm:$0xff]
        %v1867 = vld [vmem:[%s974 + $0x10] sm:$0xff]
        %v1868 = vld [vmem:[%s974 + $0x18] sm:$0xff]
        %v1870 = vsel %vm1530, %v1789, 0
        %1872 = vmatprep.subr.mxu0 0.0
        %1873 = vmatpush1.msra.mxu0 %v1865
        %1874 = vmatprep.subr.mxu0 0.0
        %1875 = vmatpush1.msra.mxu0 %v1866
        %1876 = vmatprep.subr.mxu0 0.0
        %1877 = vmatpush1.msra.mxu0 0.0
        %1878 = vmatprep.subr.mxu0 0.0
        %1879 = vmatpush1.msra.mxu0 0.0
        %1880 = vmatprep.subr.mxu0 0.0
        %1881 = vmatpush1.msra.mxu0 0.0
        %1882 = vmatprep.subr.mxu0 0.0
        %1883 = vmatpush1.msra.mxu0 0.0
        %1884 = vmatprep.subr.mxu0 0.0
        %1885 = vmatpush1.msra.mxu0 0.0
        %1886 = vmatprep.subr.mxu0 0.0
        %1887 = vmatpush1.msra.mxu0 0.0
        %1888 = vmatprep.subr.mxu0 0.0
        %1889 = vmatpush1.msra.mxu0 0.0
        %1890 = vmatprep.subr.mxu0 0.0
        %1891 = vmatpush1.msra.mxu0 0.0
        %1892 = vmatprep.subr.mxu0 0.0
        %1893 = vmatpush1.msra.mxu0 0.0
        %1894 = vmatprep.subr.mxu0 0.0
        %1895 = vmatpush1.msra.mxu0 0.0
        %1896 = vmatprep.subr.mxu0 0.0
        %1897 = vmatpush1.msra.mxu0 0.0
        %1898 = vmatprep.subr.mxu0 0.0
        %1899 = vmatpush1.msra.mxu0 0.0
        %1900 = vmatprep.subr.mxu0 0.0
        %1901 = vmatpush1.msra.mxu0 0.0
        %1902 = vmatprep.subr.mxu0 0.0
        %1903 = vmatpush1.msra.mxu0 0.0
        %1904 = vmatprep.subr.mxu0 0.0
        %1905 = vmatpush1.msra.mxu0 0.0
        %1906 = vmatprep.subr.mxu0 0.0
        %1907 = vmatpush1.msra.mxu0 0.0
        %1908 = vmatprep.subr.mxu0 0.0
        %1909 = vmatpush1.msra.mxu0 0.0
        %1910 = vmatprep.subr.mxu0 0.0
        %1911 = vmatpush1.msra.mxu0 0.0
        %1912 = vmatprep.subr.mxu0 0.0
        %1913 = vmatpush1.msra.mxu0 0.0
        %1914 = vmatprep.subr.mxu0 0.0
        %1915 = vmatpush1.msra.mxu0 0.0
        %1916 = vmatprep.subr.mxu0 0.0
        %1917 = vmatpush1.msra.mxu0 0.0
        %1918 = vmatprep.subr.mxu0 0.0
        %1919 = vmatpush1.msra.mxu0 0.0
        %1920 = vmatprep.subr.mxu0 0.0
        %1921 = vmatpush1.msra.mxu0 0.0
        %1922 = vmatprep.subr.mxu0 0.0
        %1923 = vmatpush1.msra.mxu0 0.0
        %1924 = vmatprep.subr.mxu0 0.0
        %1925 = vmatpush1.msra.mxu0 0.0
        %1926 = vmatprep.subr.mxu0 0.0
        %1927 = vmatpush1.msra.mxu0 0.0
        %1928 = vmatprep.subr.mxu0 0.0
        %1929 = vmatpush1.msra.mxu0 0.0
        %1930 = vmatprep.subr.mxu0 0.0
        %1931 = vmatpush1.msra.mxu0 0.0
        %1932 = vmatprep.subr.mxu0 0.0
        %1933 = vmatpush1.msra.mxu0 0.0
        %1934 = vmatprep.subr.mxu0 0.0
        %1935 = vmatpush1.msra.mxu0 0.0
        %1936 = vmatprep.mubr.f32.mxu0 0.0
        %1937 = vmatmul.mubr.f32.gmra.mrb[0].mxu0 %v1870
        %v1938 = vpop.f32.mrb[0].mxu0
        %v1939 = vadd.f32 0.0, %v1938
        %v1940 = vpop.f32.mrb[0].mxu0
        %1941 = vdwg.mxu0
        %v1943 = vsel %vm1530, %v1862, 0
        %1945 = vmatprep.subr.mxu0 0.0
        %1946 = vmatpush1.msra.mxu0 %v1867
        %1947 = vmatprep.subr.mxu0 0.0
        %1948 = vmatpush1.msra.mxu0 %v1868
        %1949 = vmatprep.subr.mxu0 0.0
        %1950 = vmatpush1.msra.mxu0 0.0
        %1951 = vmatprep.subr.mxu0 0.0
        %1952 = vmatpush1.msra.mxu0 0.0
        %1953 = vmatprep.subr.mxu0 0.0
        %1954 = vmatpush1.msra.mxu0 0.0
        %1955 = vmatprep.subr.mxu0 0.0
        %1956 = vmatpush1.msra.mxu0 0.0
        %1957 = vmatprep.subr.mxu0 0.0
        %1958 = vmatpush1.msra.mxu0 0.0
        %1959 = vmatprep.subr.mxu0 0.0
        %1960 = vmatpush1.msra.mxu0 0.0
        %1961 = vmatprep.subr.mxu0 0.0
        %1962 = vmatpush1.msra.mxu0 0.0
        %1963 = vmatprep.subr.mxu0 0.0
        %1964 = vmatpush1.msra.mxu0 0.0
        %1965 = vmatprep.subr.mxu0 0.0
        %1966 = vmatpush1.msra.mxu0 0.0
        %1967 = vmatprep.subr.mxu0 0.0
        %1968 = vmatpush1.msra.mxu0 0.0
        %1969 = vmatprep.subr.mxu0 0.0
        %1970 = vmatpush1.msra.mxu0 0.0
        %1971 = vmatprep.subr.mxu0 0.0
        %1972 = vmatpush1.msra.mxu0 0.0
        %1973 = vmatprep.subr.mxu0 0.0
        %1974 = vmatpush1.msra.mxu0 0.0
        %1975 = vmatprep.subr.mxu0 0.0
        %1976 = vmatpush1.msra.mxu0 0.0
        %1977 = vmatprep.subr.mxu0 0.0
        %1978 = vmatpush1.msra.mxu0 0.0
        %1979 = vmatprep.subr.mxu0 0.0
        %1980 = vmatpush1.msra.mxu0 0.0
        %1981 = vmatprep.subr.mxu0 0.0
        %1982 = vmatpush1.msra.mxu0 0.0
        %1983 = vmatprep.subr.mxu0 0.0
        %1984 = vmatpush1.msra.mxu0 0.0
        %1985 = vmatprep.subr.mxu0 0.0
        %1986 = vmatpush1.msra.mxu0 0.0
        %1987 = vmatprep.subr.mxu0 0.0
        %1988 = vmatpush1.msra.mxu0 0.0
        %1989 = vmatprep.subr.mxu0 0.0
        %1990 = vmatpush1.msra.mxu0 0.0
        %1991 = vmatprep.subr.mxu0 0.0
        %1992 = vmatpush1.msra.mxu0 0.0
        %1993 = vmatprep.subr.mxu0 0.0
        %1994 = vmatpush1.msra.mxu0 0.0
        %1995 = vmatprep.subr.mxu0 0.0
        %1996 = vmatpush1.msra.mxu0 0.0
        %1997 = vmatprep.subr.mxu0 0.0
        %1998 = vmatpush1.msra.mxu0 0.0
        %1999 = vmatprep.subr.mxu0 0.0
        %2000 = vmatpush1.msra.mxu0 0.0
        %2001 = vmatprep.subr.mxu0 0.0
        %2002 = vmatpush1.msra.mxu0 0.0
        %2003 = vmatprep.subr.mxu0 0.0
        %2004 = vmatpush1.msra.mxu0 0.0
        %2005 = vmatprep.subr.mxu0 0.0
        %2006 = vmatpush1.msra.mxu0 0.0
        %2007 = vmatprep.subr.mxu0 0.0
        %2008 = vmatpush1.msra.mxu0 0.0
        %2009 = vmatprep.mubr.f32.mxu0 0.0
        %2010 = vmatmul.mubr.f32.gmra.mrb[0].mxu0 %v1943
        %v2011 = vpop.f32.mrb[0].mxu0
        %v2012 = vadd.f32 0.0, %v2011
        %v2013 = vpop.f32.mrb[0].mxu0
        %2014 = vdwg.mxu0
        %v2015 = vsel %vm1012, %v1939, 0.0
        %v2016 = vsel %vm1012, %v2012, 0.0
        %v2017 = vadd.f32 %v2015, %v2016
        %v2018 = vld [vmem:[%s977] sm:$0x1]
        %v2020 = vlaneseq
        %v2021 = vshrl.u32 %v2020, 7
        %v2022 = vsub.s32 0, %v2021
        %v2023 = vrot.slane %v2018, %v2022
        %v2025 = vadd.f32 %v2017, %v2023
        %v2026 = vadd.f32 %v2025, %v1009
        %v2027 = vld [vmem:[%s980] sm:$0x1]
        %v2028 = vld [vmem:[%s983] sm:$0x1]
        %v2029 = vsel %vm1012, %v2026, 0.0
        %2030 = vadd.xlane.f32.xlu0 %v2029
        %v2031 = vpop.xlane.xlu0 %2030
        %v2032 = vmul.f32 %v2031, %v1016
        %v2033 = vsub.f32 %v2026, %v2032
        %v2034 = vmul.f32 %v2033, %v2033
        %v2035 = vsel %vm1012, %v2034, 0.0
        %2036 = vadd.xlane.f32.xlu0 %v2035
        %v2037 = vpop.xlane.xlu0 %2036
        %v2038 = vmul.f32 %v2037, %v1016
        %v2039 = vadd.f32 %v2038, 1e-05
        %v2040 = vrsqrt.pop %v2039
        %v2041 = vmul.f32 %v2033, %v2040
        %v2043 = vlaneseq
        %v2044 = vshrl.u32 %v2043, 7
        %v2045 = vsub.s32 0, %v2044
        %v2046 = vrot.slane %v2027, %v2045
        %v2048 = vmul.f32 %v2041, %v2046
        %v2050 = vlaneseq
        %v2051 = vshrl.u32 %v2050, 7
        %v2052 = vsub.s32 0, %v2051
        %v2053 = vrot.slane %v2028, %v2052
        %v2055 = vadd.f32 %v2048, %v2053
        %v2056 = vld [vmem:[%s988] sm:$0xff]
        %v2057 = vld [vmem:[%s988 + $0x8] sm:$0xff]
        %v2058 = vld [vmem:[%s988 + $0x10] sm:$0xff]
        %v2059 = vld [vmem:[%s988 + $0x18] sm:$0xff]
        %v2060 = vld [vmem:[%s991] sm:$0x1]
        %v2062 = vlaneseq
        %v2063 = vshrl.u32 %v2062, 7
        %v2064 = vsub.s32 0, %v2063
        %v2065 = vrot.slane %v2060, %v2064
        %v2068 = vsel %vm1012, %v2055, 0
        %2070 = vmatprep.subr.mxu0 0.0
        %2071 = vmatpush1.msra.mxu0 %v2056
        %2072 = vmatprep.subr.mxu0 0.0
        %2073 = vmatpush1.msra.mxu0 %v2057
        %2074 = vmatprep.subr.mxu0 0.0
        %2075 = vmatpush1.msra.mxu0 %v2058
        %2076 = vmatprep.subr.mxu0 0.0
        %2077 = vmatpush1.msra.mxu0 %v2059
        %2078 = vmatprep.subr.mxu0 0.0
        %2079 = vmatpush1.msra.mxu0 0.0
        %2080 = vmatprep.subr.mxu0 0.0
        %2081 = vmatpush1.msra.mxu0 0.0
        %2082 = vmatprep.subr.mxu0 0.0
        %2083 = vmatpush1.msra.mxu0 0.0
        %2084 = vmatprep.subr.mxu0 0.0
        %2085 = vmatpush1.msra.mxu0 0.0
        %2086 = vmatprep.subr.mxu0 0.0
        %2087 = vmatpush1.msra.mxu0 0.0
        %2088 = vmatprep.subr.mxu0 0.0
        %2089 = vmatpush1.msra.mxu0 0.0
        %2090 = vmatprep.subr.mxu0 0.0
        %2091 = vmatpush1.msra.mxu0 0.0
        %2092 = vmatprep.subr.mxu0 0.0
        %2093 = vmatpush1.msra.mxu0 0.0
        %2094 = vmatprep.subr.mxu0 0.0
        %2095 = vmatpush1.msra.mxu0 0.0
        %2096 = vmatprep.subr.mxu0 0.0
        %2097 = vmatpush1.msra.mxu0 0.0
        %2098 = vmatprep.subr.mxu0 0.0
        %2099 = vmatpush1.msra.mxu0 0.0
        %2100 = vmatprep.subr.mxu0 0.0
        %2101 = vmatpush1.msra.mxu0 0.0
        %2102 = vmatprep.subr.mxu0 0.0
        %2103 = vmatpush1.msra.mxu0 0.0
        %2104 = vmatprep.subr.mxu0 0.0
        %2105 = vmatpush1.msra.mxu0 0.0
        %2106 = vmatprep.subr.mxu0 0.0
        %2107 = vmatpush1.msra.mxu0 0.0
        %2108 = vmatprep.subr.mxu0 0.0
        %2109 = vmatpush1.msra.mxu0 0.0
        %2110 = vmatprep.subr.mxu0 0.0
        %2111 = vmatpush1.msra.mxu0 0.0
        %2112 = vmatprep.subr.mxu0 0.0
        %2113 = vmatpush1.msra.mxu0 0.0
        %2114 = vmatprep.subr.mxu0 0.0
        %2115 = vmatpush1.msra.mxu0 0.0
        %2116 = vmatprep.subr.mxu0 0.0
        %2117 = vmatpush1.msra.mxu0 0.0
        %2118 = vmatprep.subr.mxu0 0.0
        %2119 = vmatpush1.msra.mxu0 0.0
        %2120 = vmatprep.subr.mxu0 0.0
        %2121 = vmatpush1.msra.mxu0 0.0
        %2122 = vmatprep.subr.mxu0 0.0
        %2123 = vmatpush1.msra.mxu0 0.0
        %2124 = vmatprep.subr.mxu0 0.0
        %2125 = vmatpush1.msra.mxu0 0.0
        %2126 = vmatprep.subr.mxu0 0.0
        %2127 = vmatpush1.msra.mxu0 0.0
        %2128 = vmatprep.subr.mxu0 0.0
        %2129 = vmatpush1.msra.mxu0 0.0
        %2130 = vmatprep.subr.mxu0 0.0
        %2131 = vmatpush1.msra.mxu0 0.0
        %2132 = vmatprep.subr.mxu0 0.0
        %2133 = vmatpush1.msra.mxu0 0.0
        %2134 = vmatprep.mubr.f32.mxu0 0.0
        %2135 = vmatmul.mubr.f32.gmra.mrb[0].mxu0 %v2068
        %v2136 = vpop.f32.mrb[0].mxu0
        %v2137 = vadd.f32 %v2065, %v2136
        %v2138 = vpop.f32.mrb[0].mxu0
        %2139 = vdwg.mxu0
        %v2140 = vmax.f32 %v2137, 0.0
        %v2141 = vld [vmem:[%s996] sm:$0xff]
        %v2142 = vld [vmem:[%s996 + $0x8] sm:$0xff]
        %v2143 = vld [vmem:[%s996 + $0x10] sm:$0xff]
        %v2144 = vld [vmem:[%s996 + $0x18] sm:$0xff]
        %v2145 = vld [vmem:[%s996 + $0x20] sm:$0xff]
        %v2146 = vld [vmem:[%s996 + $0x28] sm:$0xff]
        %v2147 = vld [vmem:[%s996 + $0x30] sm:$0xff]
        %v2148 = vld [vmem:[%s996 + $0x38] sm:$0xff]
        %v2149 = vld [vmem:[%s999] sm:$0x1]
        %v2151 = vlaneseq
        %v2152 = vshrl.u32 %v2151, 7
        %v2153 = vsub.s32 0, %v2152
        %v2154 = vrot.slane %v2149, %v2153
        %vm2156 = vcmask 523264
        %v2158 = vsel %vm2156, %v2140, 0
        %2160 = vmatprep.subr.mxu0 0.0
        %2161 = vmatpush1.msra.mxu0 %v2141
        %2162 = vmatprep.subr.mxu0 0.0
        %2163 = vmatpush1.msra.mxu0 %v2142
        %2164 = vmatprep.subr.mxu0 0.0
        %2165 = vmatpush1.msra.mxu0 %v2143
        %2166 = vmatprep.subr.mxu0 0.0
        %2167 = vmatpush1.msra.mxu0 %v2144
        %2168 = vmatprep.subr.mxu0 0.0
        %2169 = vmatpush1.msra.mxu0 %v2145
        %2170 = vmatprep.subr.mxu0 0.0
        %2171 = vmatpush1.msra.mxu0 %v2146
        %2172 = vmatprep.subr.mxu0 0.0
        %2173 = vmatpush1.msra.mxu0 %v2147
        %2174 = vmatprep.subr.mxu0 0.0
        %2175 = vmatpush1.msra.mxu0 %v2148
        %2176 = vmatprep.subr.mxu0 0.0
        %2177 = vmatpush1.msra.mxu0 0.0
        %2178 = vmatprep.subr.mxu0 0.0
        %2179 = vmatpush1.msra.mxu0 0.0
        %2180 = vmatprep.subr.mxu0 0.0
        %2181 = vmatpush1.msra.mxu0 0.0
        %2182 = vmatprep.subr.mxu0 0.0
        %2183 = vmatpush1.msra.mxu0 0.0
        %2184 = vmatprep.subr.mxu0 0.0
        %2185 = vmatpush1.msra.mxu0 0.0
        %2186 = vmatprep.subr.mxu0 0.0
        %2187 = vmatpush1.msra.mxu0 0.0
        %2188 = vmatprep.subr.mxu0 0.0
        %2189 = vmatpush1.msra.mxu0 0.0
        %2190 = vmatprep.subr.mxu0 0.0
        %2191 = vmatpush1.msra.mxu0 0.0
        %2192 = vmatprep.subr.mxu0 0.0
        %2193 = vmatpush1.msra.mxu0 0.0
        %2194 = vmatprep.subr.mxu0 0.0
        %2195 = vmatpush1.msra.mxu0 0.0
        %2196 = vmatprep.subr.mxu0 0.0
        %2197 = vmatpush1.msra.mxu0 0.0
        %2198 = vmatprep.subr.mxu0 0.0
        %2199 = vmatpush1.msra.mxu0 0.0
        %2200 = vmatprep.subr.mxu0 0.0
        %2201 = vmatpush1.msra.mxu0 0.0
        %2202 = vmatprep.subr.mxu0 0.0
        %2203 = vmatpush1.msra.mxu0 0.0
        %2204 = vmatprep.subr.mxu0 0.0
        %2205 = vmatpush1.msra.mxu0 0.0
        %2206 = vmatprep.subr.mxu0 0.0
        %2207 = vmatpush1.msra.mxu0 0.0
        %2208 = vmatprep.subr.mxu0 0.0
        %2209 = vmatpush1.msra.mxu0 0.0
        %2210 = vmatprep.subr.mxu0 0.0
        %2211 = vmatpush1.msra.mxu0 0.0
        %2212 = vmatprep.subr.mxu0 0.0
        %2213 = vmatpush1.msra.mxu0 0.0
        %2214 = vmatprep.subr.mxu0 0.0
        %2215 = vmatpush1.msra.mxu0 0.0
        %2216 = vmatprep.subr.mxu0 0.0
        %2217 = vmatpush1.msra.mxu0 0.0
        %2218 = vmatprep.subr.mxu0 0.0
        %2219 = vmatpush1.msra.mxu0 0.0
        %2220 = vmatprep.subr.mxu0 0.0
        %2221 = vmatpush1.msra.mxu0 0.0
        %2222 = vmatprep.subr.mxu0 0.0
        %2223 = vmatpush1.msra.mxu0 0.0
        %2224 = vmatprep.mubr.f32.mxu0 0.0
        %2225 = vmatmul.mubr.f32.gmra.mrb[0].mxu0 %v2158
        %v2226 = vpop.f32.mrb[0].mxu0
        %v2227 = vadd.f32 %v2154, %v2226
        %v2228 = vpop.f32.mrb[0].mxu0
        %2229 = vdwg.mxu0
        %v2230 = vadd.f32 %v2227, %v2026
        %2231 = vst.msk [vmem:[#allocation2] sm:$0xff] %vm1012, %v2230
        %p2232 = scmp.eq.s32.totalorder %s46, 3
        // Predicated region
        $region113: #{tpu_custom_call.1} parent=107 // pred_check
          %p2233 = pneg %p2232
        $region114: #{tpu_custom_call.1} parent=107 // pred_check_branch
          %2235 = sbr.rel (%p2233) target = $region116
        $region115: #{tpu_custom_call.1} parent=107 // pred_region
          %v2236 = vld [vmem:[%s18] sm:$0x1]
          %v2237 = vld [vmem:[%s19] sm:$0x1]
          %v2238 = vsel %vm1012, %v2230, 0.0
          %2239 = vadd.xlane.f32.xlu0 %v2238
          %v2240 = vpop.xlane.xlu0 %2239
          %v2241 = vmul.f32 %v2240, %v1016
          %v2242 = vsub.f32 %v2230, %v2241
          %v2243 = vmul.f32 %v2242, %v2242
          %v2244 = vsel %vm1012, %v2243, 0.0
          %2245 = vadd.xlane.f32.xlu0 %v2244
          %v2246 = vpop.xlane.xlu0 %2245
          %v2247 = vmul.f32 %v2246, %v1016
          %v2248 = vadd.f32 %v2247, 1e-05
          %v2249 = vrsqrt.pop %v2248
          %v2250 = vmul.f32 %v2242, %v2249
          %v2252 = vlaneseq
          %v2253 = vshrl.u32 %v2252, 7
          %v2254 = vsub.s32 0, %v2253
          %v2255 = vrot.slane %v2236, %v2254
          %v2257 = vmul.f32 %v2250, %v2255
          %v2259 = vlaneseq
          %v2260 = vshrl.u32 %v2259, 7
          %v2261 = vsub.s32 0, %v2260
          %v2262 = vrot.slane %v2237, %v2261
          %v2264 = vadd.f32 %v2257, %v2262
          %v2265 = vld [vmem:[%s20] sm:$0xff]
          %v2266 = vld [vmem:[%s20 + $0x8] sm:$0xff]
          %v2267 = vld [vmem:[%s20 + $0x10] sm:$0xff]
          %v2268 = vld [vmem:[%s20 + $0x18] sm:$0xff]
          %v2269 = vld [vmem:[%s21] sm:$0x1]
          %v2271 = vlaneseq
          %v2272 = vshrl.u32 %v2271, 7
          %v2273 = vsub.s32 0, %v2272
          %v2274 = vrot.slane %v2269, %v2273
          %v2277 = vsel %vm1012, %v2264, 0
          %2279 = vmatprep.subr.mxu0 0.0
          %2280 = vmatpush1.msra.mxu0 %v2265
          %2281 = vmatprep.subr.mxu0 0.0
          %2282 = vmatpush1.msra.mxu0 %v2266
          %2283 = vmatprep.subr.mxu0 0.0
          %2284 = vmatpush1.msra.mxu0 %v2267
          %2285 = vmatprep.subr.mxu0 0.0
          %2286 = vmatpush1.msra.mxu0 %v2268
          %2287 = vmatprep.subr.mxu0 0.0
          %2288 = vmatpush1.msra.mxu0 0.0
          %2289 = vmatprep.subr.mxu0 0.0
          %2290 = vmatpush1.msra.mxu0 0.0
          %2291 = vmatprep.subr.mxu0 0.0
          %2292 = vmatpush1.msra.mxu0 0.0
          %2293 = vmatprep.subr.mxu0 0.0
          %2294 = vmatpush1.msra.mxu0 0.0
          %2295 = vmatprep.subr.mxu0 0.0
          %2296 = vmatpush1.msra.mxu0 0.0
          %2297 = vmatprep.subr.mxu0 0.0
          %2298 = vmatpush1.msra.mxu0 0.0
          %2299 = vmatprep.subr.mxu0 0.0
          %2300 = vmatpush1.msra.mxu0 0.0
          %2301 = vmatprep.subr.mxu0 0.0
          %2302 = vmatpush1.msra.mxu0 0.0
          %2303 = vmatprep.subr.mxu0 0.0
          %2304 = vmatpush1.msra.mxu0 0.0
          %2305 = vmatprep.subr.mxu0 0.0
          %2306 = vmatpush1.msra.mxu0 0.0
          %2307 = vmatprep.subr.mxu0 0.0
          %2308 = vmatpush1.msra.mxu0 0.0
          %2309 = vmatprep.subr.mxu0 0.0
          %2310 = vmatpush1.msra.mxu0 0.0
          %2311 = vmatprep.subr.mxu0 0.0
          %2312 = vmatpush1.msra.mxu0 0.0
          %2313 = vmatprep.subr.mxu0 0.0
          %2314 = vmatpush1.msra.mxu0 0.0
          %2315 = vmatprep.subr.mxu0 0.0
          %2316 = vmatpush1.msra.mxu0 0.0
          %2317 = vmatprep.subr.mxu0 0.0
          %2318 = vmatpush1.msra.mxu0 0.0
          %2319 = vmatprep.subr.mxu0 0.0
          %2320 = vmatpush1.msra.mxu0 0.0
          %2321 = vmatprep.subr.mxu0 0.0
          %2322 = vmatpush1.msra.mxu0 0.0
          %2323 = vmatprep.subr.mxu0 0.0
          %2324 = vmatpush1.msra.mxu0 0.0
          %2325 = vmatprep.subr.mxu0 0.0
          %2326 = vmatpush1.msra.mxu0 0.0
          %2327 = vmatprep.subr.mxu0 0.0
          %2328 = vmatpush1.msra.mxu0 0.0
          %2329 = vmatprep.subr.mxu0 0.0
          %2330 = vmatpush1.msra.mxu0 0.0
          %2331 = vmatprep.subr.mxu0 0.0
          %2332 = vmatpush1.msra.mxu0 0.0
          %2333 = vmatprep.subr.mxu0 0.0
          %2334 = vmatpush1.msra.mxu0 0.0
          %2335 = vmatprep.subr.mxu0 0.0
          %2336 = vmatpush1.msra.mxu0 0.0
          %2337 = vmatprep.subr.mxu0 0.0
          %2338 = vmatpush1.msra.mxu0 0.0
          %2339 = vmatprep.subr.mxu0 0.0
          %2340 = vmatpush1.msra.mxu0 0.0
          %2341 = vmatprep.subr.mxu0 0.0
          %2342 = vmatpush1.msra.mxu0 0.0
          %2343 = vmatprep.mubr.f32.mxu0 0.0
          %2344 = vmatmul.mubr.f32.gmra.mrb[0].mxu0 %v2277
          %v2345 = vpop.f32.mrb[0].mxu0
          %v2346 = vadd.f32 %v2274, %v2345
          %v2347 = vpop.f32.mrb[0].mxu0
          %2348 = vdwg.mxu0
          %2349 = vst [vmem:[%s925] sm:$0xff] %v2346
        $region116: #{tpu_custom_call.1} parent=107 // pred_fallthru
          _
        %s2350 = sand.u32 %s608, 1
        %s2351 = scalar_lea.sflag [#allocation4], %s2350
        %s2352 = sand.u32 %s608, 1
        %s2353 = smul.addr %s2352, 8
        %s2354 = scalar_lea.vmem [#allocation3], %s2353
        %s2355 = sand.u32 %s636, 1
        %s2356 = scalar_lea.sflag [#allocation6], %s2355
        %s2357 = sand.u32 %s636, 1
        %s2358 = smul.addr %s2357, 16
        %s2359 = scalar_lea.vmem [#allocation5], %s2358
        // Predicated region
        $region117: #{tpu_custom_call.1} parent=107 // pred_check
          %p2360 = pneg %p618
        $region118: #{tpu_custom_call.1} parent=107 // pred_check_branch
          %2362 = sbr.rel (%p2360) target = $region120
        $region119: #{tpu_custom_call.1} parent=107 // pred_region
          %s2364 = ssub.s32 128, 128
          %2365 = vsyncadd %s2351, %s2364
          %s2366 = smul.addr %s45, 128
          %s2367 = scalar_lea.hbm %s22, %s2366
          %s2369 = sshll.u32 %s2354, 4
          %s2370 = int_to_ptr.vmem [resolvable:$true] %s2369
          %2372 = dma.vmem_to_hbm [thread:$0]  %s2370, 128, %s2367, %s2351
        $region120: #{tpu_custom_call.1} parent=107 // pred_fallthru
          _
        // Predicated region
        $region121: #{tpu_custom_call.1} parent=107 // pred_check
          %p2373 = pneg %p646
        $region122: #{tpu_custom_call.1} parent=107 // pred_check_branch
          %2375 = sbr.rel (%p2373) target = $region124
        $region123: #{tpu_custom_call.1} parent=107 // pred_region
          %s2377 = ssub.s32 256, 256
          %2378 = vsyncadd %s2356, %s2377
          %s2379 = smul.addr %s46, 2
          %s2380 = smul.addr %s45, 8
          %s2381 = sadd.s32 %s2379, %s2380
          %s2382 = smul.addr %s2381, 128
          %s2383 = scalar_lea.hbm %s23, %s2382
          %s2384 = sshll.u32 %s2359, 4
          %s2385 = int_to_ptr.vmem [resolvable:$true] %s2384
          %2390 = dma.vmem_to_hbm [thread:$0]  %s2385, 256, %s2383, %s2356, 128, 128, 8
        $region124: #{tpu_custom_call.1} parent=107 // pred_fallthru
          _
      $region108: #{tpu_custom_call.1} parent=5 // pred_fallthru
        _
      %p2391 = scmp.le.s32.totalorder 2, %s36
      // Predicated region
      $region125: #{tpu_custom_call.1} parent=5 // pred_check
        %p2392 = pneg %p2391
      $region126: #{tpu_custom_call.1} parent=5 // pred_check_branch
        %2394 = sbr.rel (%p2392) target = $region128
      $region127: #{tpu_custom_call.1} parent=5 // pred_region
        %s2395 = ssub.s32 %s36, 2
        // Predicated region
        $region129: #{tpu_custom_call.1} parent=127 // pred_check
          %p2396 = pneg %p624
        $region130: #{tpu_custom_call.1} parent=127 // pred_check_branch
          %2398 = sbr.rel (%p2396) target = $region132
        $region131: #{tpu_custom_call.1} parent=127 // pred_region
          %s2399 = sand.u32 %s609, 1
          %s2400 = scalar_lea.sflag [#allocation4], %s2399
          %s2401 = sand.u32 %s609, 1
          %s2402 = smul.addr %s2401, 8
          %s2403 = scalar_lea.vmem [#allocation3], %s2402
          %2404 = dma.done %s2400, 128
        $region132: #{tpu_custom_call.1} parent=127 // pred_fallthru
          _
        // Predicated region
        $region133: #{tpu_custom_call.1} parent=127 // pred_check
          %p2405 = pneg %p652
        $region134: #{tpu_custom_call.1} parent=127 // pred_check_branch
          %2407 = sbr.rel (%p2405) target = $region136
        $region135: #{tpu_custom_call.1} parent=127 // pred_region
          %s2408 = sand.u32 %s637, 1
          %s2409 = scalar_lea.sflag [#allocation6], %s2408
          %s2410 = sand.u32 %s637, 1
          %s2411 = smul.addr %s2410, 16
          %s2412 = scalar_lea.vmem [#allocation5], %s2411
          %2413 = dma.done %s2409, 256
        $region136: #{tpu_custom_call.1} parent=127 // pred_fallthru
          _
      $region128: #{tpu_custom_call.1} parent=5 // pred_fallthru
        _
    $region6: #{tpu_custom_call.1} parent=1 // loop_footer
      %s40 = sadd.s32 1, %s36
    $region7: #{tpu_custom_call.1} parent=1 // loop_footer_branch
      %35 = sbr.rel target = $region3
    $region8: #{tpu_custom_call.1} parent=1 // loop_exit
      _
    %2414 = vsyncpa [#allocation4], 1
    %s2415 = scalar_lea.sflag [#allocation4], 1
    %2416 = vsyncpa %s2415, 1
    %2417 = vsyncpa [#allocation6], 1
    %s2418 = scalar_lea.sflag [#allocation6], 1
    %2419 = vsyncpa %s2418, 1

</llo_original>
